<compile_context>
chip_gen: v5e
topology: v5e:2x2
jax: 0.10.0
libtpu: 0.0.40
codegen_flags: <defaults>
</compile_context>

<pallas_src>
import functools
import math

import jax
import jax.numpy as jnp
from jax.experimental import pallas as pl
from jax.experimental.pallas import tpu as pltpu

# ---------------- config (small, consistent with the module) ----------------
B = 2            # batch
S = 8            # seqlen
D = 32           # encoder_dim
H = 4            # encoder_n_heads (n_kv_heads == n_heads -> n_rep == 1)
DH = D // H      # head_dim
EPS = 1e-5       # norm_eps
MULTIPLE_OF = 16
ROPE_THETA = 10000.0

# FeedForward hidden dim, exactly as in FeedForward.__init__ (ffn_dim_multiplier=None)
_hidden = 4 * D
_hidden = int(2 * _hidden / 3)
FFN_DIM = MULTIPLE_OF * ((_hidden + MULTIPLE_OF - 1) // MULTIPLE_OF)  # -> 96
FFN_PAD = ((FFN_DIM + 127) // 128) * 128                              # -> 128 (lane-dense)


# ------------------------------ fused Pallas kernel ---------------------------
def _block_kernel(x_ref, wqkv_ref, wo_ref, w13_ref, w2_ref,
                  cos_ref, sin_ref, ropep_ref, mask_ref, o_ref,
                  *, eps, n_heads, head_dim, ffn_pad):
    d = n_heads * head_dim
    x = x_ref[0].astype(jnp.float32)                          # (S, D)

    # ---- attention RMSNorm (norm weight pre-folded into wqkv rows) ----
    var = jnp.mean(x * x, axis=-1, keepdims=True)
    xn = x * jax.lax.rsqrt(var + eps)

    # ---- fused QKV projection: one (S,D) x (D,3D) matmul; q already scaled ----
    qkv = jnp.dot(xn, wqkv_ref[...], preferred_element_type=jnp.float32)
    q = qkv[:, 0:d]
    k = qkv[:, d:2 * d]
    v = qkv[:, 2 * d:3 * d]

    # ---- RoPE (interleaved pairs) via sign-swap permutation matmul (MXU) ----
    cos = cos_ref[...]
    sin = sin_ref[...]
    P = ropep_ref[...]
    q = q * cos + jnp.dot(q, P, preferred_element_type=jnp.float32) * sin
    k = k * cos + jnp.dot(k, P, preferred_element_type=jnp.float32) * sin

    # ---- per-head attention; wo folded in per head (concat(oh) @ wo == sum oh @ wo_h) ----
    mask = mask_ref[0]                                        # (1, S) additive
    wo = wo_ref[...]
    attn_proj = jnp.zeros((x.shape[0], d), jnp.float32)
    for h in range(n_heads):                                  # static unroll, H=4
        sl = slice(h * head_dim, (h + 1) * head_dim)
        qh = q[:, sl]
        kh = k[:, sl]
        vh = v[:, sl]
        scores = jax.lax.dot_general(qh, kh, (((1,), (1,)), ((), ())),
                                     preferred_element_type=jnp.float32)
        scores = scores + mask
        m = jnp.max(scores, axis=-1, keepdims=True)
        e = jnp.exp(scores - m)
        p = e * pl.reciprocal(jnp.sum(e, axis=-1, keepdims=True), approx=False)
        oh = jnp.dot(p, vh, preferred_element_type=jnp.float32)          # (S, DH)
        attn_proj = attn_proj + jnp.dot(oh, wo[sl, :],
                                        preferred_element_type=jnp.float32)

    hres = x + attn_proj                                      # first residual

    # ---- FFN RMSNorm (weight folded into w13 rows) + fused SwiGLU ----
    var2 = jnp.mean(hres * hres, axis=-1, keepdims=True)
    hn = hres * jax.lax.rsqrt(var2 + eps)
    h13 = jnp.dot(hn, w13_ref[...], preferred_element_type=jnp.float32)  # (S, 2*ffn_pad)
    h1 = h13[:, :ffn_pad]
    h3 = h13[:, ffn_pad:]
    g = (h1 * jax.nn.sigmoid(h1)) * h3                        # SiLU(w1 x) * (w3 x)
    ffn = jnp.dot(g, w2_ref[...], preferred_element_type=jnp.float32)

    o_ref[0] = (hres + ffn).astype(o_ref.dtype)               # second residual


# ------------------------------ wrapper ---------------------------------------
def transformer_block(x, params, cos, sin, mask_add):
    """x: (B,S,D) float32; cos/sin: (S, DH//2); mask_add: (B,1,S) additive float."""
    b, s, d = x.shape
    assert d == H * DH
    scale = 1.0 / math.sqrt(DH)

    # fold: attention_norm weight into rows, 1/sqrt(head_dim) into wq columns
    wqkv = jnp.concatenate([params["wq"] * scale, params["wk"], params["wv"]], axis=1)
    wqkv = params["attn_norm_w"][:, None] * wqkv                                # (D,3D)

    # pad each FFN half to a 128-lane multiple -> vreg-aligned split, lane-dense gating;
    # fold ffn_norm weight into the rows
    w1p = jnp.zeros((d, FFN_PAD), jnp.float32).at[:, :FFN_DIM].set(params["w1"])
    w3p = jnp.zeros((d, FFN_PAD), jnp.float32).at[:, :FFN_DIM].set(params["w3"])
    w13 = params["ffn_norm_w"][:, None] * jnp.concatenate([w1p, w3p], axis=1)  # (D,2*128)
    w2p = jnp.zeros((FFN_PAD, d), jnp.float32).at[:FFN_DIM, :].set(params["w2"])

    # RoPE glue: full-width cos/sin (pattern repeated per pair, tiled per head) and
    # the interleaved pair-swap matrix: (x @ P)[:, 2i] = -x[:, 2i+1], [:, 2i+1] = x[:, 2i]
    cos_full = jnp.tile(jnp.repeat(cos, 2, axis=-1), (1, H))                    # (S, D)
    sin_full = jnp.tile(jnp.repeat(sin, 2, axis=-1), (1, H))
    row = jnp.arange(d)[:, None]
    col = jnp.arange(d)[None, :]
    ropeP = jnp.where((col == row + 1) & (row % 2 == 0), 1.0,
                      jnp.where((col == row - 1) & (row % 2 == 1), -1.0, 0.0)
                      ).astype(jnp.float32)

    kernel = functools.partial(_block_kernel, eps=EPS,
                               n_heads=H, head_dim=DH, ffn_pad=FFN_PAD)

    return pl.pallas_call(
        kernel,
        out_shape=jax.ShapeDtypeStruct((b, s, d), x.dtype),
        grid=(b,),
        in_specs=[
            pl.BlockSpec((1, s, d), lambda i: (i, 0, 0)),          # x (per batch)
            pl.BlockSpec((d, 3 * d), lambda i: (0, 0)),            # wq|wk|wv fused (norm+scale folded)
            pl.BlockSpec((d, d), lambda i: (0, 0)),                # wo
            pl.BlockSpec((d, 2 * FFN_PAD), lambda i: (0, 0)),      # w1|w3 fused (padded, norm folded)
            pl.BlockSpec((FFN_PAD, d), lambda i: (0, 0)),          # w2 (padded rows)
            pl.BlockSpec((s, d), lambda i: (0, 0)),                # cos (full width)
            pl.BlockSpec((s, d), lambda i: (0, 0)),                # sin (full width)
            pl.BlockSpec((d, d), lambda i: (0, 0)),                # RoPE pair-swap matrix
            pl.BlockSpec((1, 1, s), lambda i: (i, 0, 0)),          # additive mask per batch
        ],
        out_specs=pl.BlockSpec((1, s, d), lambda i: (i, 0, 0)),
        compiler_params=pltpu.CompilerParams(
            dimension_semantics=("parallel",),   # lets v7x's 2 TCs split the batch
        ),
    )(x, wqkv, params["wo"], w13, w2p, cos_full, sin_full, ropeP, mask_add)


# ------------------------------ pure-JAX reference ----------------------------
def reference_block(x, p, cos, sin, mask_add):
    def rms(t, w):
        tf = t.astype(jnp.float32)
        var = jnp.mean(tf * tf, axis=-1, keepdims=True)
        return w * (tf * jax.lax.rsqrt(var + EPS))

    b, s, d = x.shape
    xn = rms(x, p["attn_norm_w"])
    xq = (xn @ p["wq"]).reshape(b, s, H, DH)
    xk = (xn @ p["wk"]).reshape(b, s, H, DH)
    xv = (xn @ p["wv"]).reshape(b, s, H, DH)

    def rope(t):
        tr = t.reshape(b, s, H, DH // 2, 2)
        te, to = tr[..., 0], tr[..., 1]
        c = cos[None, :, None, :]
        sn = sin[None, :, None, :]
        return jnp.stack([te * c - to * sn, te * sn + to * c], axis=-1).reshape(
            b, s, H, DH
        )

    xq, xk = rope(xq), rope(xk)
    q = xq.transpose(0, 2, 1, 3)
    k = xk.transpose(0, 2, 1, 3)
    v = xv.transpose(0, 2, 1, 3)
    scores = jnp.einsum("bhqd,bhkd->bhqk", q, k) / jnp.sqrt(jnp.float32(DH))
    scores = scores + mask_add[:, None]  # (B,1,1,S)
    attnw = jax.nn.softmax(scores, axis=-1)
    out = jnp.einsum("bhqk,bhkd->bhqd", attnw, v)
    out = out.transpose(0, 2, 1, 3).reshape(b, s, d) @ p["wo"]
    h = x.astype(jnp.float32) + out
    hn = rms(h, p["ffn_norm_w"])
    h1 = hn @ p["w1"]
    h3 = hn @ p["w3"]
    ffn = (h1 * jax.nn.sigmoid(h1) * h3) @ p["w2"]
    return (h + ffn).astype(x.dtype)


# ------------------------------------ main ------------------------------------
if __name__ == "__main__":
    key = jax.random.PRNGKey(0)
    keys = jax.random.split(key, 10)

    def w(k, shape, scale=0.05):
        return (scale * jax.random.normal(k, shape)).astype(jnp.float32)

    params = {
        "attn_norm_w": jnp.ones((D,), jnp.float32),
        "ffn_norm_w": jnp.ones((D,), jnp.float32),
        "wq": w(keys[0], (D, H * DH)),
        "wk": w(keys[1], (D, H * DH)),
        "wv": w(keys[2], (D, H * DH)),
        "wo": w(keys[3], (H * DH, D)),
        "w1": w(keys[4], (D, FFN_DIM)),
        "w3": w(keys[5], (D, FFN_DIM)),
        "w2": w(keys[6], (FFN_DIM, D)),
    }

    x = jax.random.normal(keys[7], (B, S, D), dtype=jnp.float32)

    # precompute_freqs_cis (Llama): cos/sin of shape (S, DH//2)
    freqs = 1.0 / (ROPE_THETA ** (jnp.arange(0, DH, 2, dtype=jnp.float32) / DH))
    t = jnp.arange(S, dtype=jnp.float32)
    angles = jnp.outer(t, freqs)
    cos, sin = jnp.cos(angles), jnp.sin(angles)

    # additive float attention mask (B, 1, S): batch 1 has its last key masked out
    mask_add = jnp.zeros((B, 1, S), jnp.float32)
    mask_add = mask_add.at[1, 0, S - 1].set(-1e9)

    # TODO(synk): use_cache=True KV-cache path, _upad_input (flash-attn unpadding),
    # optional use_qk_norm and is_causal branches are not exercised by the default
    # forward (use_cache=False) and are not implemented.

    out = jax.block_until_ready(transformer_block(x, params, cos, sin, mask_add))
    ref = jax.block_until_ready(reference_block(x, params, cos, sin, mask_add))

    assert out.shape == (B, S, D) and out.dtype == x.dtype
    assert jnp.allclose(out, ref, rtol=1e-4, atol=1e-4), float(
        jnp.max(jnp.abs(out - ref))
    )
    print("KERNEL_OK")
</pallas_src>

<mosaic_0001>
module attributes {stable_mosaic.version = 11 : i64} {
  func.func @_block_kernel(%arg0: i32, %arg1: memref<1x8x32xf32, #tpu.memory_space<vmem>>, %arg2: memref<32x96xf32, #tpu.memory_space<vmem>>, %arg3: memref<32x32xf32, #tpu.memory_space<vmem>>, %arg4: memref<32x256xf32, #tpu.memory_space<vmem>>, %arg5: memref<128x32xf32, #tpu.memory_space<vmem>>, %arg6: memref<8x32xf32, #tpu.memory_space<vmem>>, %arg7: memref<8x32xf32, #tpu.memory_space<vmem>>, %arg8: memref<32x32xf32, #tpu.memory_space<vmem>>, %arg9: memref<1x1x8xf32, #tpu.memory_space<vmem>>, %arg10: memref<1x8x32xf32, #tpu.memory_space<vmem>>) attributes {dimension_semantics = [#tpu.dimension_semantics<parallel>], iteration_bounds = array<i64: 2>, scalar_prefetch = 0 : i64, scratch_operands = 0 : i64, tpu.core_type = #tpu.core_type<tc>, window_params = [{transform_indices = @transform_0, window_bounds = array<i64: 1, 8, 32>}, {pipeline_mode = #tpu.pipeline_mode<synchronous>, transform_indices = @transform_1, window_bounds = array<i64: 32, 96>}, {pipeline_mode = #tpu.pipeline_mode<synchronous>, transform_indices = @transform_2, window_bounds = array<i64: 32, 32>}, {pipeline_mode = #tpu.pipeline_mode<synchronous>, transform_indices = @transform_3, window_bounds = array<i64: 32, 256>}, {pipeline_mode = #tpu.pipeline_mode<synchronous>, transform_indices = @transform_4, window_bounds = array<i64: 128, 32>}, {pipeline_mode = #tpu.pipeline_mode<synchronous>, transform_indices = @transform_5, window_bounds = array<i64: 8, 32>}, {pipeline_mode = #tpu.pipeline_mode<synchronous>, transform_indices = @transform_6, window_bounds = array<i64: 8, 32>}, {pipeline_mode = #tpu.pipeline_mode<synchronous>, transform_indices = @transform_7, window_bounds = array<i64: 32, 32>}, {transform_indices = @transform_8, window_bounds = array<i64: 1, 1, 8>}, {transform_indices = @transform_9, window_bounds = array<i64: 1, 8, 32>}]} {
    %c0 = arith.constant 0 : index
    %c0_0 = arith.constant 0 : index
    %c0_1 = arith.constant 0 : index
    %0 = vector.load %arg1[%c0, %c0_0, %c0_1] : memref<1x8x32xf32, #tpu.memory_space<vmem>>, vector<1x8x32xf32>
    %1 = vector.shape_cast %0 : vector<1x8x32xf32> to vector<8x32xf32>
    %2 = arith.mulf %1, %1 : vector<8x32xf32>
    %cst = arith.constant dense<0.000000e+00> : vector<8xf32>
    %3 = vector.multi_reduction <add>, %2, %cst [1] : vector<8x32xf32> to vector<8xf32>
    %4 = vector.shape_cast %3 : vector<8xf32> to vector<8x1xf32>
    %cst_2 = arith.constant 3.200000e+01 : f32
    %5 = vector.broadcast %cst_2 : f32 to vector<8x1xf32>
    %6 = arith.divf %4, %5 : vector<8x1xf32>
    %cst_3 = arith.constant 9.99999974E-6 : f32
    %7 = vector.broadcast %cst_3 : f32 to vector<8x1xf32>
    %8 = arith.addf %6, %7 : vector<8x1xf32>
    %9 = math.rsqrt %8 : vector<8x1xf32>
    %10 = vector.broadcast %9 : vector<8x1xf32> to vector<8x32xf32>
    %11 = arith.mulf %1, %10 : vector<8x32xf32>
    %c0_4 = arith.constant 0 : index
    %c0_5 = arith.constant 0 : index
    %12 = vector.load %arg2[%c0_4, %c0_5] : memref<32x96xf32, #tpu.memory_space<vmem>>, vector<32x96xf32>
    %cst_6 = arith.constant dense<0.000000e+00> : vector<8x96xf32>
    %13 = tpu.matmul %11, %12, %cst_6 {dimension_numbers = #tpu.dot_dimension_numbers<[1], [0], [0], [1], [0, 0, 1, 1], [], []>} : vector<8x32xf32>, vector<32x96xf32>, vector<8x96xf32> -> vector<8x96xf32>
    %14 = vector.extract_strided_slice %13 {offsets = [0, 0], sizes = [8, 32], strides = [1, 1]} : vector<8x96xf32> to vector<8x32xf32>
    %15 = vector.extract_strided_slice %13 {offsets = [0, 32], sizes = [8, 32], strides = [1, 1]} : vector<8x96xf32> to vector<8x32xf32>
    %16 = vector.extract_strided_slice %13 {offsets = [0, 64], sizes = [8, 32], strides = [1, 1]} : vector<8x96xf32> to vector<8x32xf32>
    %c0_7 = arith.constant 0 : index
    %c0_8 = arith.constant 0 : index
    %17 = vector.load %arg6[%c0_7, %c0_8] : memref<8x32xf32, #tpu.memory_space<vmem>>, vector<8x32xf32>
    %c0_9 = arith.constant 0 : index
    %c0_10 = arith.constant 0 : index
    %18 = vector.load %arg7[%c0_9, %c0_10] : memref<8x32xf32, #tpu.memory_space<vmem>>, vector<8x32xf32>
    %c0_11 = arith.constant 0 : index
    %c0_12 = arith.constant 0 : index
    %19 = vector.load %arg8[%c0_11, %c0_12] : memref<32x32xf32, #tpu.memory_space<vmem>>, vector<32x32xf32>
    %20 = arith.mulf %14, %17 : vector<8x32xf32>
    %cst_13 = arith.constant dense<0.000000e+00> : vector<8x32xf32>
    %21 = tpu.matmul %14, %19, %cst_13 {dimension_numbers = #tpu.dot_dimension_numbers<[1], [0], [0], [1], [0, 0, 1, 1], [], []>} : vector<8x32xf32>, vector<32x32xf32>, vector<8x32xf32> -> vector<8x32xf32>
    %22 = arith.mulf %21, %18 : vector<8x32xf32>
    %23 = arith.addf %20, %22 : vector<8x32xf32>
    %24 = arith.mulf %15, %17 : vector<8x32xf32>
    %cst_14 = arith.constant dense<0.000000e+00> : vector<8x32xf32>
    %25 = tpu.matmul %15, %19, %cst_14 {dimension_numbers = #tpu.dot_dimension_numbers<[1], [0], [0], [1], [0, 0, 1, 1], [], []>} : vector<8x32xf32>, vector<32x32xf32>, vector<8x32xf32> -> vector<8x32xf32>
    %26 = arith.mulf %25, %18 : vector<8x32xf32>
    %27 = arith.addf %24, %26 : vector<8x32xf32>
    %c0_15 = arith.constant 0 : index
    %c0_16 = arith.constant 0 : index
    %c0_17 = arith.constant 0 : index
    %28 = vector.load %arg9[%c0_15, %c0_16, %c0_17] : memref<1x1x8xf32, #tpu.memory_space<vmem>>, vector<1x1x8xf32>
    %29 = vector.shape_cast %28 : vector<1x1x8xf32> to vector<1x8xf32>
    %c0_18 = arith.constant 0 : index
    %c0_19 = arith.constant 0 : index
    %30 = vector.load %arg3[%c0_18, %c0_19] : memref<32x32xf32, #tpu.memory_space<vmem>>, vector<32x32xf32>
    %cst_20 = arith.constant 0.000000e+00 : f32
    %31 = vector.broadcast %cst_20 : f32 to vector<8x32xf32>
    %32 = vector.extract_strided_slice %23 {offsets = [0, 0], sizes = [8, 8], strides = [1, 1]} : vector<8x32xf32> to vector<8x8xf32>
    %33 = vector.extract_strided_slice %27 {offsets = [0, 0], sizes = [8, 8], strides = [1, 1]} : vector<8x32xf32> to vector<8x8xf32>
    %34 = vector.extract_strided_slice %16 {offsets = [0, 0], sizes = [8, 8], strides = [1, 1]} : vector<8x32xf32> to vector<8x8xf32>
    %cst_21 = arith.constant dense<0.000000e+00> : vector<8x8xf32>
    %35 = tpu.matmul %32, %33, %cst_21 {dimension_numbers = #tpu.dot_dimension_numbers<[1], [1], [0], [0], [0, 0, 1, 0], [], []>} : vector<8x8xf32>, vector<8x8xf32>, vector<8x8xf32> -> vector<8x8xf32>
    %36 = vector.broadcast %29 : vector<1x8xf32> to vector<8x8xf32>
    %37 = arith.addf %35, %36 : vector<8x8xf32>
    %cst_22 = arith.constant dense<0xFF800000> : vector<8xf32>
    %38 = vector.multi_reduction <maximumf>, %37, %cst_22 [1] : vector<8x8xf32> to vector<8xf32>
    %39 = vector.shape_cast %38 : vector<8xf32> to vector<8x1xf32>
    %40 = vector.broadcast %39 : vector<8x1xf32> to vector<8x8xf32>
    %41 = arith.subf %37, %40 : vector<8x8xf32>
    %42 = math.exp %41 : vector<8x8xf32>
    %cst_23 = arith.constant dense<0.000000e+00> : vector<8xf32>
    %43 = vector.multi_reduction <add>, %42, %cst_23 [1] : vector<8x8xf32> to vector<8xf32>
    %44 = vector.shape_cast %43 : vector<8xf32> to vector<8x1xf32>
    %45 = tpu.reciprocal %44 : vector<8x1xf32> -> vector<8x1xf32>
    %46 = vector.broadcast %45 : vector<8x1xf32> to vector<8x8xf32>
    %47 = arith.mulf %42, %46 : vector<8x8xf32>
    %cst_24 = arith.constant dense<0.000000e+00> : vector<8x8xf32>
    %48 = tpu.matmul %47, %34, %cst_24 {dimension_numbers = #tpu.dot_dimension_numbers<[1], [0], [0], [1], [0, 0, 1, 1], [], []>} : vector<8x8xf32>, vector<8x8xf32>, vector<8x8xf32> -> vector<8x8xf32>
    %49 = vector.extract_strided_slice %30 {offsets = [0, 0], sizes = [8, 32], strides = [1, 1]} : vector<32x32xf32> to vector<8x32xf32>
    %cst_25 = arith.constant dense<0.000000e+00> : vector<8x32xf32>
    %50 = tpu.matmul %48, %49, %cst_25 {dimension_numbers = #tpu.dot_dimension_numbers<[1], [0], [0], [1], [0, 0, 1, 1], [], []>} : vector<8x8xf32>, vector<8x32xf32>, vector<8x32xf32> -> vector<8x32xf32>
    %51 = arith.addf %31, %50 : vector<8x32xf32>
    %52 = vector.extract_strided_slice %23 {offsets = [0, 8], sizes = [8, 8], strides = [1, 1]} : vector<8x32xf32> to vector<8x8xf32>
    %53 = vector.extract_strided_slice %27 {offsets = [0, 8], sizes = [8, 8], strides = [1, 1]} : vector<8x32xf32> to vector<8x8xf32>
    %54 = vector.extract_strided_slice %16 {offsets = [0, 8], sizes = [8, 8], strides = [1, 1]} : vector<8x32xf32> to vector<8x8xf32>
    %cst_26 = arith.constant dense<0.000000e+00> : vector<8x8xf32>
    %55 = tpu.matmul %52, %53, %cst_26 {dimension_numbers = #tpu.dot_dimension_numbers<[1], [1], [0], [0], [0, 0, 1, 0], [], []>} : vector<8x8xf32>, vector<8x8xf32>, vector<8x8xf32> -> vector<8x8xf32>
    %56 = vector.broadcast %29 : vector<1x8xf32> to vector<8x8xf32>
    %57 = arith.addf %55, %56 : vector<8x8xf32>
    %cst_27 = arith.constant dense<0xFF800000> : vector<8xf32>
    %58 = vector.multi_reduction <maximumf>, %57, %cst_27 [1] : vector<8x8xf32> to vector<8xf32>
    %59 = vector.shape_cast %58 : vector<8xf32> to vector<8x1xf32>
    %60 = vector.broadcast %59 : vector<8x1xf32> to vector<8x8xf32>
    %61 = arith.subf %57, %60 : vector<8x8xf32>
    %62 = math.exp %61 : vector<8x8xf32>
    %cst_28 = arith.constant dense<0.000000e+00> : vector<8xf32>
    %63 = vector.multi_reduction <add>, %62, %cst_28 [1] : vector<8x8xf32> to vector<8xf32>
    %64 = vector.shape_cast %63 : vector<8xf32> to vector<8x1xf32>
    %65 = tpu.reciprocal %64 : vector<8x1xf32> -> vector<8x1xf32>
    %66 = vector.broadcast %65 : vector<8x1xf32> to vector<8x8xf32>
    %67 = arith.mulf %62, %66 : vector<8x8xf32>
    %cst_29 = arith.constant dense<0.000000e+00> : vector<8x8xf32>
    %68 = tpu.matmul %67, %54, %cst_29 {dimension_numbers = #tpu.dot_dimension_numbers<[1], [0], [0], [1], [0, 0, 1, 1], [], []>} : vector<8x8xf32>, vector<8x8xf32>, vector<8x8xf32> -> vector<8x8xf32>
    %69 = vector.extract_strided_slice %30 {offsets = [8, 0], sizes = [8, 32], strides = [1, 1]} : vector<32x32xf32> to vector<8x32xf32>
    %cst_30 = arith.constant dense<0.000000e+00> : vector<8x32xf32>
    %70 = tpu.matmul %68, %69, %cst_30 {dimension_numbers = #tpu.dot_dimension_numbers<[1], [0], [0], [1], [0, 0, 1, 1], [], []>} : vector<8x8xf32>, vector<8x32xf32>, vector<8x32xf32> -> vector<8x32xf32>
    %71 = arith.addf %51, %70 : vector<8x32xf32>
    %72 = vector.extract_strided_slice %23 {offsets = [0, 16], sizes = [8, 8], strides = [1, 1]} : vector<8x32xf32> to vector<8x8xf32>
    %73 = vector.extract_strided_slice %27 {offsets = [0, 16], sizes = [8, 8], strides = [1, 1]} : vector<8x32xf32> to vector<8x8xf32>
    %74 = vector.extract_strided_slice %16 {offsets = [0, 16], sizes = [8, 8], strides = [1, 1]} : vector<8x32xf32> to vector<8x8xf32>
    %cst_31 = arith.constant dense<0.000000e+00> : vector<8x8xf32>
    %75 = tpu.matmul %72, %73, %cst_31 {dimension_numbers = #tpu.dot_dimension_numbers<[1], [1], [0], [0], [0, 0, 1, 0], [], []>} : vector<8x8xf32>, vector<8x8xf32>, vector<8x8xf32> -> vector<8x8xf32>
    %76 = vector.broadcast %29 : vector<1x8xf32> to vector<8x8xf32>
    %77 = arith.addf %75, %76 : vector<8x8xf32>
    %cst_32 = arith.constant dense<0xFF800000> : vector<8xf32>
    %78 = vector.multi_reduction <maximumf>, %77, %cst_32 [1] : vector<8x8xf32> to vector<8xf32>
    %79 = vector.shape_cast %78 : vector<8xf32> to vector<8x1xf32>
    %80 = vector.broadcast %79 : vector<8x1xf32> to vector<8x8xf32>
    %81 = arith.subf %77, %80 : vector<8x8xf32>
    %82 = math.exp %81 : vector<8x8xf32>
    %cst_33 = arith.constant dense<0.000000e+00> : vector<8xf32>
    %83 = vector.multi_reduction <add>, %82, %cst_33 [1] : vector<8x8xf32> to vector<8xf32>
    %84 = vector.shape_cast %83 : vector<8xf32> to vector<8x1xf32>
    %85 = tpu.reciprocal %84 : vector<8x1xf32> -> vector<8x1xf32>
    %86 = vector.broadcast %85 : vector<8x1xf32> to vector<8x8xf32>
    %87 = arith.mulf %82, %86 : vector<8x8xf32>
    %cst_34 = arith.constant dense<0.000000e+00> : vector<8x8xf32>
    %88 = tpu.matmul %87, %74, %cst_34 {dimension_numbers = #tpu.dot_dimension_numbers<[1], [0], [0], [1], [0, 0, 1, 1], [], []>} : vector<8x8xf32>, vector<8x8xf32>, vector<8x8xf32> -> vector<8x8xf32>
    %89 = vector.extract_strided_slice %30 {offsets = [16, 0], sizes = [8, 32], strides = [1, 1]} : vector<32x32xf32> to vector<8x32xf32>
    %cst_35 = arith.constant dense<0.000000e+00> : vector<8x32xf32>
    %90 = tpu.matmul %88, %89, %cst_35 {dimension_numbers = #tpu.dot_dimension_numbers<[1], [0], [0], [1], [0, 0, 1, 1], [], []>} : vector<8x8xf32>, vector<8x32xf32>, vector<8x32xf32> -> vector<8x32xf32>
    %91 = arith.addf %71, %90 : vector<8x32xf32>
    %92 = vector.extract_strided_slice %23 {offsets = [0, 24], sizes = [8, 8], strides = [1, 1]} : vector<8x32xf32> to vector<8x8xf32>
    %93 = vector.extract_strided_slice %27 {offsets = [0, 24], sizes = [8, 8], strides = [1, 1]} : vector<8x32xf32> to vector<8x8xf32>
    %94 = vector.extract_strided_slice %16 {offsets = [0, 24], sizes = [8, 8], strides = [1, 1]} : vector<8x32xf32> to vector<8x8xf32>
    %cst_36 = arith.constant dense<0.000000e+00> : vector<8x8xf32>
    %95 = tpu.matmul %92, %93, %cst_36 {dimension_numbers = #tpu.dot_dimension_numbers<[1], [1], [0], [0], [0, 0, 1, 0], [], []>} : vector<8x8xf32>, vector<8x8xf32>, vector<8x8xf32> -> vector<8x8xf32>
    %96 = vector.broadcast %29 : vector<1x8xf32> to vector<8x8xf32>
    %97 = arith.addf %95, %96 : vector<8x8xf32>
    %cst_37 = arith.constant dense<0xFF800000> : vector<8xf32>
    %98 = vector.multi_reduction <maximumf>, %97, %cst_37 [1] : vector<8x8xf32> to vector<8xf32>
    %99 = vector.shape_cast %98 : vector<8xf32> to vector<8x1xf32>
    %100 = vector.broadcast %99 : vector<8x1xf32> to vector<8x8xf32>
    %101 = arith.subf %97, %100 : vector<8x8xf32>
    %102 = math.exp %101 : vector<8x8xf32>
    %cst_38 = arith.constant dense<0.000000e+00> : vector<8xf32>
    %103 = vector.multi_reduction <add>, %102, %cst_38 [1] : vector<8x8xf32> to vector<8xf32>
    %104 = vector.shape_cast %103 : vector<8xf32> to vector<8x1xf32>
    %105 = tpu.reciprocal %104 : vector<8x1xf32> -> vector<8x1xf32>
    %106 = vector.broadcast %105 : vector<8x1xf32> to vector<8x8xf32>
    %107 = arith.mulf %102, %106 : vector<8x8xf32>
    %cst_39 = arith.constant dense<0.000000e+00> : vector<8x8xf32>
    %108 = tpu.matmul %107, %94, %cst_39 {dimension_numbers = #tpu.dot_dimension_numbers<[1], [0], [0], [1], [0, 0, 1, 1], [], []>} : vector<8x8xf32>, vector<8x8xf32>, vector<8x8xf32> -> vector<8x8xf32>
    %109 = vector.extract_strided_slice %30 {offsets = [24, 0], sizes = [8, 32], strides = [1, 1]} : vector<32x32xf32> to vector<8x32xf32>
    %cst_40 = arith.constant dense<0.000000e+00> : vector<8x32xf32>
    %110 = tpu.matmul %108, %109, %cst_40 {dimension_numbers = #tpu.dot_dimension_numbers<[1], [0], [0], [1], [0, 0, 1, 1], [], []>} : vector<8x8xf32>, vector<8x32xf32>, vector<8x32xf32> -> vector<8x32xf32>
    %111 = arith.addf %91, %110 : vector<8x32xf32>
    %112 = arith.addf %1, %111 : vector<8x32xf32>
    %113 = arith.mulf %112, %112 : vector<8x32xf32>
    %cst_41 = arith.constant dense<0.000000e+00> : vector<8xf32>
    %114 = vector.multi_reduction <add>, %113, %cst_41 [1] : vector<8x32xf32> to vector<8xf32>
    %115 = vector.shape_cast %114 : vector<8xf32> to vector<8x1xf32>
    %cst_42 = arith.constant 3.200000e+01 : f32
    %116 = vector.broadcast %cst_42 : f32 to vector<8x1xf32>
    %117 = arith.divf %115, %116 : vector<8x1xf32>
    %cst_43 = arith.constant 9.99999974E-6 : f32
    %118 = vector.broadcast %cst_43 : f32 to vector<8x1xf32>
    %119 = arith.addf %117, %118 : vector<8x1xf32>
    %120 = math.rsqrt %119 : vector<8x1xf32>
    %121 = vector.broadcast %120 : vector<8x1xf32> to vector<8x32xf32>
    %122 = arith.mulf %112, %121 : vector<8x32xf32>
    %c0_44 = arith.constant 0 : index
    %c0_45 = arith.constant 0 : index
    %123 = vector.load %arg4[%c0_44, %c0_45] : memref<32x256xf32, #tpu.memory_space<vmem>>, vector<32x256xf32>
    %cst_46 = arith.constant dense<0.000000e+00> : vector<8x256xf32>
    %124 = tpu.matmul %122, %123, %cst_46 {dimension_numbers = #tpu.dot_dimension_numbers<[1], [0], [0], [1], [0, 0, 1, 1], [], []>} : vector<8x32xf32>, vector<32x256xf32>, vector<8x256xf32> -> vector<8x256xf32>
    %125 = vector.extract_strided_slice %124 {offsets = [0, 0], sizes = [8, 128], strides = [1, 1]} : vector<8x256xf32> to vector<8x128xf32>
    %126 = vector.extract_strided_slice %124 {offsets = [0, 128], sizes = [8, 128], strides = [1, 1]} : vector<8x256xf32> to vector<8x128xf32>
    %127 = arith.negf %125 : vector<8x128xf32>
    %128 = math.exp %127 : vector<8x128xf32>
    %cst_47 = arith.constant 1.000000e+00 : f32
    %129 = vector.broadcast %cst_47 : f32 to vector<8x128xf32>
    %130 = arith.addf %129, %128 : vector<8x128xf32>
    %131 = arith.divf %129, %130 : vector<8x128xf32>
    %132 = arith.mulf %125, %131 : vector<8x128xf32>
    %133 = arith.mulf %132, %126 : vector<8x128xf32>
    %c0_48 = arith.constant 0 : index
    %c0_49 = arith.constant 0 : index
    %134 = vector.load %arg5[%c0_48, %c0_49] : memref<128x32xf32, #tpu.memory_space<vmem>>, vector<128x32xf32>
    %cst_50 = arith.constant dense<0.000000e+00> : vector<8x32xf32>
    %135 = tpu.matmul %133, %134, %cst_50 {dimension_numbers = #tpu.dot_dimension_numbers<[1], [0], [0], [1], [0, 0, 1, 1], [], []>} : vector<8x128xf32>, vector<128x32xf32>, vector<8x32xf32> -> vector<8x32xf32>
    %136 = arith.addf %112, %135 : vector<8x32xf32>
    %c0_51 = arith.constant 0 : index
    %c0_52 = arith.constant 0 : index
    %c0_53 = arith.constant 0 : index
    %137 = vector.load %arg10[%c0_51, %c0_52, %c0_53] : memref<1x8x32xf32, #tpu.memory_space<vmem>>, vector<1x8x32xf32>
    %138 = vector.shape_cast %137 : vector<1x8x32xf32> to vector<8x32xf32>
    %139 = vector.shape_cast %136 : vector<8x32xf32> to vector<1x8x32xf32>
    tpu.vector_store %arg10[%c0_51, %c0_52, %c0_53], %139 {strides = array<i32>} : memref<1x8x32xf32, #tpu.memory_space<vmem>>, vector<1x8x32xf32>,
    return
  }
  func.func @transform_0(%arg0: i32) -> (i32, i32, i32) {
    %c0_i32 = arith.constant 0 : i32
    %c0_i32_0 = arith.constant 0 : i32
    %c0_i32_1 = arith.constant 0 : i32
    return %arg0, %c0_i32, %c0_i32_0 : i32, i32, i32
  }
  func.func @transform_1(%arg0: i32) -> (i32, i32) {
    %c0_i32 = arith.constant 0 : i32
    %c0_i32_0 = arith.constant 0 : i32
    %c0_i32_1 = arith.constant 0 : i32
    return %c0_i32, %c0_i32_0 : i32, i32
  }
  func.func @transform_2(%arg0: i32) -> (i32, i32) {
    %c0_i32 = arith.constant 0 : i32
    %c0_i32_0 = arith.constant 0 : i32
    %c0_i32_1 = arith.constant 0 : i32
    return %c0_i32, %c0_i32_0 : i32, i32
  }
  func.func @transform_3(%arg0: i32) -> (i32, i32) {
    %c0_i32 = arith.constant 0 : i32
    %c0_i32_0 = arith.constant 0 : i32
    %c0_i32_1 = arith.constant 0 : i32
    return %c0_i32, %c0_i32_0 : i32, i32
  }
  func.func @transform_4(%arg0: i32) -> (i32, i32) {
    %c0_i32 = arith.constant 0 : i32
    %c0_i32_0 = arith.constant 0 : i32
    %c0_i32_1 = arith.constant 0 : i32
    return %c0_i32, %c0_i32_0 : i32, i32
  }
  func.func @transform_5(%arg0: i32) -> (i32, i32) {
    %c0_i32 = arith.constant 0 : i32
    %c0_i32_0 = arith.constant 0 : i32
    %c0_i32_1 = arith.constant 0 : i32
    return %c0_i32, %c0_i32_0 : i32, i32
  }
  func.func @transform_6(%arg0: i32) -> (i32, i32) {
    %c0_i32 = arith.constant 0 : i32
    %c0_i32_0 = arith.constant 0 : i32
    %c0_i32_1 = arith.constant 0 : i32
    return %c0_i32, %c0_i32_0 : i32, i32
  }
  func.func @transform_7(%arg0: i32) -> (i32, i32) {
    %c0_i32 = arith.constant 0 : i32
    %c0_i32_0 = arith.constant 0 : i32
    %c0_i32_1 = arith.constant 0 : i32
    return %c0_i32, %c0_i32_0 : i32, i32
  }
  func.func @transform_8(%arg0: i32) -> (i32, i32, i32) {
    %c0_i32 = arith.constant 0 : i32
    %c0_i32_0 = arith.constant 0 : i32
    %c0_i32_1 = arith.constant 0 : i32
    return %arg0, %c0_i32, %c0_i32_0 : i32, i32, i32
  }
  func.func @transform_9(%arg0: i32) -> (i32, i32, i32) {
    %c0_i32 = arith.constant 0 : i32
    %c0_i32_0 = arith.constant 0 : i32
    %c0_i32_1 = arith.constant 0 : i32
    return %arg0, %c0_i32, %c0_i32_0 : i32, i32, i32
  }
}

</mosaic_0001>

<llo_original>
// kernel: tpu_custom_call.1
$region0: #{tpu_custom_call.1}
  #allocation0 [shape = 'u32[]', space=smem, size = 0x4, offset = 0x4, fixed_abs, tag = 'smem constant byte address 0x4 - core index']
  #allocation1 [shape = 'u32[72,128]{1,0:T(1,128)}', space=vmem, size = 0x9000, scoped, tag = 'internal scratch']
  %s0 = inlined_call_operand.hbm [shape: f32[2,8,32], index: 0, kind: input, shape index: {}]
  %s1 = inlined_call_operand.vmem [shape: f32[32,96], index: 1, kind: input, shape index: {}]
  %s2 = inlined_call_operand.vmem [shape: f32[32,32], index: 2, kind: input, shape index: {}]
  %s3 = inlined_call_operand.vmem [shape: f32[32,256], index: 3, kind: input, shape index: {}]
  %s4 = inlined_call_operand.vmem [shape: f32[128,32], index: 4, kind: input, shape index: {}]
  %s5 = inlined_call_operand.hbm [shape: f32[8,32], index: 5, kind: input, shape index: {}]
  %s6 = inlined_call_operand.hbm [shape: f32[8,32], index: 6, kind: input, shape index: {}]
  %s7 = inlined_call_operand.vmem [shape: f32[32,32], index: 7, kind: input, shape index: {}]
  %s8 = inlined_call_operand.vmem [shape: f32[2,1,8], index: 8, kind: input, shape index: {}]
  %s9 = inlined_call_operand.hbm [shape: f32[2,8,32], index: 9, kind: output, shape index: {}]
  %s10 = sld [smem:[#allocation0]]
  $region81: #{tpu_custom_call.1} parent=0
    _
  %s12 = ssub.s32 1, %s10
  %s13 = scalar_select 0, %s12, %s10
  $region1: #{tpu_custom_call.1} parent=0
    #allocation2 [shape = 'u8[8192]{0}', space=vmem, size = 0x2000, scoped, tag = 'input window, operand 0']
    #allocation3 [shape = 's32[2]{0}', space=sflag, size = 0x8, scoped, tag = 'scoped memory for tpu_custom_call.1']
    #allocation4 [shape = 's32[2]{0}', space=sflag, size = 0x8, scoped, tag = 'scoped memory for tpu_custom_call.1']
    #allocation5 [shape = 'u8[4096]{0}', space=vmem, size = 0x1000, scoped, tag = 'input window, operand 5, single buffered']
    #allocation6 [shape = 's32[1]{0}', space=sflag, size = 0x4, scoped, tag = 'scoped memory for tpu_custom_call.1']
    #allocation7 [shape = 'u8[4096]{0}', space=vmem, size = 0x1000, scoped, tag = 'input window, operand 6, single buffered']
    #allocation8 [shape = 'u8[8192]{0}', space=vmem, size = 0x2000, scoped, tag = 'output window, operand 0']
    %14 = vsyncpa [#allocation3], 0
    %s15 = scalar_lea.sflag [#allocation3], 1
    %16 = vsyncpa %s15, 0
    %17 = vsyncpa [#allocation6], 0
    %18 = vsyncpa [#allocation4], 0
    %s19 = scalar_lea.sflag [#allocation4], 1
    %20 = vsyncpa %s19, 0
    loop: start=0, step=1, limit=4
    $region2: #{tpu_custom_call.1} parent=1 // loop_pre_header
      _
    $region3: #{tpu_custom_call.1} parent=1 // loop_header
      %s22 = sphi 0, %s26
      %p23 = scmp.ge.s32.totalorder %s22, 4
      %s32 = sphi 0, %s34
      %s35 = sphi 0, %s32
      %s36 = sphi 0, %s35
      %s52 = sphi 0, %s36
      %s56 = sphi 0, %s56
      %s58 = sphi 0, %s56
      %s59 = sphi 0, %s58
      %s73 = sphi 0, %s59
      %s77 = sphi 0, %s77
      %s79 = sphi 0, %s77
      %s80 = sphi 0, %s79
      %s94 = sphi 0, %s80
      %s98 = sphi 0, %s98
      %s100 = sphi 0, %s98
      %s101 = sphi 0, %s100
      %s115 = sphi 0, %s101
      %s119 = sphi 0, %s119
      %s121 = sphi 0, %s119
      %s122 = sphi 0, %s121
      %s136 = sphi 0, %s122
      %s140 = sphi 0, %s140
      %s142 = sphi 0, %s140
      %s143 = sphi 0, %s142
      %s157 = sphi 0, %s143
      %s161 = sphi 0, %s161
      %s163 = sphi 0, %s161
      %s164 = sphi 0, %s163
      %s178 = sphi 0, %s164
      %s182 = sphi 0, %s182
      %s184 = sphi 0, %s182
      %s185 = sphi 0, %s184
      %s199 = sphi 0, %s185
      %s205 = sphi 0, %s207
      %s208 = sphi 0, %s205
      %s209 = sphi 0, %s208
      %s225 = sphi 0, %s209
      %s231 = sphi 0, %s233
      %s234 = sphi 0, %s231
      %s235 = sphi 0, %s234
      %s251 = sphi 0, %s235
    $region4: #{tpu_custom_call.1} parent=1 // loop_header_branch
      %25 = sbr.rel (%p23) target = $region8
    $region5: #{tpu_custom_call.1} parent=1 // loop_body
      %s27 = ssub.s32 %s22, 1
      %s28 = ssub.s32 %s22, 2
      %s29 = sadd.s32 %s22, 1
      %s30 = ssub.s32 %s22, %s29
      %p31 = scmp.eq.s32.totalorder %s30, 0
      %s33 = sadd.s32 %s32, 1
      %s34 = scalar_select %p31, %s32, %s33
      %p37 = pneg %p31
      %p38 = scmp.eq.s32.totalorder %s22, 1
      %p39 = por %p37, %p38
      %p40 = scmp.ne.s32.totalorder %s32, %s35
      %p41 = scmp.eq.s32.totalorder %s22, 0
      %p42 = por %p40, %p41
      %p43 = scmp.ne.s32.totalorder %s32, %s35
      %p44 = scmp.eq.s32.totalorder %s27, 1
      %p45 = por %p43, %p44
      %p46 = scmp.ne.s32.totalorder %s35, %s36
      %p47 = scmp.eq.s32.totalorder %s27, 0
      %p48 = por %p46, %p47
      %p49 = scmp.ne.s32.totalorder %s35, %s36
      %p50 = scmp.eq.s32.totalorder %s28, 1
      %p51 = por %p49, %p50
      %p53 = scmp.ne.s32.totalorder %s36, %s52
      %p54 = scmp.eq.s32.totalorder %s28, 0
      %p55 = por %p53, %p54
      %s57 = sadd.s32 %s56, 1
      %p60 = scmp.eq.s32.totalorder %s22, 1
      %p61 = scmp.ne.s32.totalorder %s56, %s58
      %p62 = scmp.eq.s32.totalorder %s22, 0
      %p63 = por %p61, %p62
      %p64 = scmp.ne.s32.totalorder %s56, %s58
      %p65 = scmp.eq.s32.totalorder %s27, 1
      %p66 = por %p64, %p65
      %p67 = scmp.ne.s32.totalorder %s58, %s59
      %p68 = scmp.eq.s32.totalorder %s27, 0
      %p69 = por %p67, %p68
      %p70 = scmp.ne.s32.totalorder %s58, %s59
      %p71 = scmp.eq.s32.totalorder %s28, 1
      %p72 = por %p70, %p71
      %p74 = scmp.ne.s32.totalorder %s59, %s73
      %p75 = scmp.eq.s32.totalorder %s28, 0
      %p76 = por %p74, %p75
      %s78 = sadd.s32 %s77, 1
      %p81 = scmp.eq.s32.totalorder %s22, 1
      %p82 = scmp.ne.s32.totalorder %s77, %s79
      %p83 = scmp.eq.s32.totalorder %s22, 0
      %p84 = por %p82, %p83
      %p85 = scmp.ne.s32.totalorder %s77, %s79
      %p86 = scmp.eq.s32.totalorder %s27, 1
      %p87 = por %p85, %p86
      %p88 = scmp.ne.s32.totalorder %s79, %s80
      %p89 = scmp.eq.s32.totalorder %s27, 0
      %p90 = por %p88, %p89
      %p91 = scmp.ne.s32.totalorder %s79, %s80
      %p92 = scmp.eq.s32.totalorder %s28, 1
      %p93 = por %p91, %p92
      %p95 = scmp.ne.s32.totalorder %s80, %s94
      %p96 = scmp.eq.s32.totalorder %s28, 0
      %p97 = por %p95, %p96
      %s99 = sadd.s32 %s98, 1
      %p102 = scmp.eq.s32.totalorder %s22, 1
      %p103 = scmp.ne.s32.totalorder %s98, %s100
      %p104 = scmp.eq.s32.totalorder %s22, 0
      %p105 = por %p103, %p104
      %p106 = scmp.ne.s32.totalorder %s98, %s100
      %p107 = scmp.eq.s32.totalorder %s27, 1
      %p108 = por %p106, %p107
      %p109 = scmp.ne.s32.totalorder %s100, %s101
      %p110 = scmp.eq.s32.totalorder %s27, 0
      %p111 = por %p109, %p110
      %p112 = scmp.ne.s32.totalorder %s100, %s101
      %p113 = scmp.eq.s32.totalorder %s28, 1
      %p114 = por %p112, %p113
      %p116 = scmp.ne.s32.totalorder %s101, %s115
      %p117 = scmp.eq.s32.totalorder %s28, 0
      %p118 = por %p116, %p117
      %s120 = sadd.s32 %s119, 1
      %p123 = scmp.eq.s32.totalorder %s22, 1
      %p124 = scmp.ne.s32.totalorder %s119, %s121
      %p125 = scmp.eq.s32.totalorder %s22, 0
      %p126 = por %p124, %p125
      %p127 = scmp.ne.s32.totalorder %s119, %s121
      %p128 = scmp.eq.s32.totalorder %s27, 1
      %p129 = por %p127, %p128
      %p130 = scmp.ne.s32.totalorder %s121, %s122
      %p131 = scmp.eq.s32.totalorder %s27, 0
      %p132 = por %p130, %p131
      %p133 = scmp.ne.s32.totalorder %s121, %s122
      %p134 = scmp.eq.s32.totalorder %s28, 1
      %p135 = por %p133, %p134
      %p137 = scmp.ne.s32.totalorder %s122, %s136
      %p138 = scmp.eq.s32.totalorder %s28, 0
      %p139 = por %p137, %p138
      %s141 = sadd.s32 %s140, 1
      %p144 = scmp.eq.s32.totalorder %s22, 1
      %p145 = scmp.ne.s32.totalorder %s140, %s142
      %p146 = scmp.eq.s32.totalorder %s22, 0
      %p147 = por %p145, %p146
      %p148 = scmp.ne.s32.totalorder %s140, %s142
      %p149 = scmp.eq.s32.totalorder %s27, 1
      %p150 = por %p148, %p149
      %p151 = scmp.ne.s32.totalorder %s142, %s143
      %p152 = scmp.eq.s32.totalorder %s27, 0
      %p153 = por %p151, %p152
      %p154 = scmp.ne.s32.totalorder %s142, %s143
      %p155 = scmp.eq.s32.totalorder %s28, 1
      %p156 = por %p154, %p155
      %p158 = scmp.ne.s32.totalorder %s143, %s157
      %p159 = scmp.eq.s32.totalorder %s28, 0
      %p160 = por %p158, %p159
      %s162 = sadd.s32 %s161, 1
      %p165 = scmp.eq.s32.totalorder %s22, 1
      %p166 = scmp.ne.s32.totalorder %s161, %s163
      %p167 = scmp.eq.s32.totalorder %s22, 0
      %p168 = por %p166, %p167
      %p169 = scmp.ne.s32.totalorder %s161, %s163
      %p170 = scmp.eq.s32.totalorder %s27, 1
      %p171 = por %p169, %p170
      %p172 = scmp.ne.s32.totalorder %s163, %s164
      %p173 = scmp.eq.s32.totalorder %s27, 0
      %p174 = por %p172, %p173
      %p175 = scmp.ne.s32.totalorder %s163, %s164
      %p176 = scmp.eq.s32.totalorder %s28, 1
      %p177 = por %p175, %p176
      %p179 = scmp.ne.s32.totalorder %s164, %s178
      %p180 = scmp.eq.s32.totalorder %s28, 0
      %p181 = por %p179, %p180
      %s183 = sadd.s32 %s182, 1
      %p186 = scmp.eq.s32.totalorder %s22, 1
      %p187 = scmp.ne.s32.totalorder %s182, %s184
      %p188 = scmp.eq.s32.totalorder %s22, 0
      %p189 = por %p187, %p188
      %p190 = scmp.ne.s32.totalorder %s182, %s184
      %p191 = scmp.eq.s32.totalorder %s27, 1
      %p192 = por %p190, %p191
      %p193 = scmp.ne.s32.totalorder %s184, %s185
      %p194 = scmp.eq.s32.totalorder %s27, 0
      %p195 = por %p193, %p194
      %p196 = scmp.ne.s32.totalorder %s184, %s185
      %p197 = scmp.eq.s32.totalorder %s28, 1
      %p198 = por %p196, %p197
      %p200 = scmp.ne.s32.totalorder %s185, %s199
      %p201 = scmp.eq.s32.totalorder %s28, 0
      %p202 = por %p200, %p201
      %s203 = ssub.s32 %s22, %s29
      %p204 = scmp.eq.s32.totalorder %s203, 0
      %s206 = sadd.s32 %s205, 1
      %s207 = scalar_select %p204, %s205, %s206
      %p210 = pneg %p204
      %p211 = scmp.eq.s32.totalorder %s22, 1
      %p212 = por %p210, %p211
      %p213 = scmp.ne.s32.totalorder %s205, %s208
      %p214 = scmp.eq.s32.totalorder %s22, 0
      %p215 = por %p213, %p214
      %p216 = scmp.ne.s32.totalorder %s205, %s208
      %p217 = scmp.eq.s32.totalorder %s27, 1
      %p218 = por %p216, %p217
      %p219 = scmp.ne.s32.totalorder %s208, %s209
      %p220 = scmp.eq.s32.totalorder %s27, 0
      %p221 = por %p219, %p220
      %p222 = scmp.ne.s32.totalorder %s208, %s209
      %p223 = scmp.eq.s32.totalorder %s28, 1
      %p224 = por %p222, %p223
      %p226 = scmp.ne.s32.totalorder %s209, %s225
      %p227 = scmp.eq.s32.totalorder %s28, 0
      %p228 = por %p226, %p227
      %s229 = ssub.s32 %s22, %s29
      %p230 = scmp.eq.s32.totalorder %s229, 0
      %s232 = sadd.s32 %s231, 1
      %s233 = scalar_select %p230, %s231, %s232
      %p236 = pneg %p230
      %p237 = scmp.eq.s32.totalorder %s22, 1
      %p238 = por %p236, %p237
      %p239 = scmp.ne.s32.totalorder %s231, %s234
      %p240 = scmp.eq.s32.totalorder %s22, 0
      %p241 = por %p239, %p240
      %p242 = scmp.ne.s32.totalorder %s231, %s234
      %p243 = scmp.eq.s32.totalorder %s27, 1
      %p244 = por %p242, %p243
      %p245 = scmp.ne.s32.totalorder %s234, %s235
      %p246 = scmp.eq.s32.totalorder %s27, 0
      %p247 = por %p245, %p246
      %p248 = scmp.ne.s32.totalorder %s234, %s235
      %p249 = scmp.eq.s32.totalorder %s28, 1
      %p250 = por %p248, %p249
      %p252 = scmp.ne.s32.totalorder %s235, %s251
      %p253 = scmp.eq.s32.totalorder %s28, 0
      %p254 = por %p252, %p253
      %p255 = scmp.le.s32.totalorder 1, %s22
      %p256 = scmp.lt.s32.totalorder %s22, 3
      %p257 = pnand %p255, %p256
      %p258 = pneg %p257
      // Predicated region
      $region9: #{tpu_custom_call.1} parent=5 // pred_check
        _
      $region10: #{tpu_custom_call.1} parent=5 // pred_check_branch
        %260 = sbr.rel (%p257) target = $region12
      $region11: #{tpu_custom_call.1} parent=5 // pred_region
        %s261 = ssub.s32 %s22, 1
        // Predicated region
        $region13: #{tpu_custom_call.1} parent=11 // pred_check
          %p262 = pneg %p69
        $region14: #{tpu_custom_call.1} parent=11 // pred_check_branch
          %264 = sbr.rel (%p262) target = $region16
        $region15: #{tpu_custom_call.1} parent=11 // pred_region
          _
        $region16: #{tpu_custom_call.1} parent=11 // pred_fallthru
          _
        // Predicated region
        $region17: #{tpu_custom_call.1} parent=11 // pred_check
          %p265 = pneg %p90
        $region18: #{tpu_custom_call.1} parent=11 // pred_check_branch
          %267 = sbr.rel (%p265) target = $region20
        $region19: #{tpu_custom_call.1} parent=11 // pred_region
          _
        $region20: #{tpu_custom_call.1} parent=11 // pred_fallthru
          _
        // Predicated region
        $region21: #{tpu_custom_call.1} parent=11 // pred_check
          %p268 = pneg %p111
        $region22: #{tpu_custom_call.1} parent=11 // pred_check_branch
          %270 = sbr.rel (%p268) target = $region24
        $region23: #{tpu_custom_call.1} parent=11 // pred_region
          _
        $region24: #{tpu_custom_call.1} parent=11 // pred_fallthru
          _
        // Predicated region
        $region25: #{tpu_custom_call.1} parent=11 // pred_check
          %p271 = pneg %p132
        $region26: #{tpu_custom_call.1} parent=11 // pred_check_branch
          %273 = sbr.rel (%p271) target = $region28
        $region27: #{tpu_custom_call.1} parent=11 // pred_region
          _
        $region28: #{tpu_custom_call.1} parent=11 // pred_fallthru
          _
        // Predicated region
        $region29: #{tpu_custom_call.1} parent=11 // pred_check
          %p274 = pneg %p153
        $region30: #{tpu_custom_call.1} parent=11 // pred_check_branch
          %276 = sbr.rel (%p274) target = $region32
        $region31: #{tpu_custom_call.1} parent=11 // pred_region
          %278 = vsyncadd [#allocation6], 0
          %s280 = sshll.u32 %s5, 4
          %s281 = int_to_ptr.hbm [resolvable:$true] %s280
          %s282 = sshll.u32 [#allocation5], 4
          %s283 = int_to_ptr.vmem [resolvable:$true] %s282
          %285 = dma.hbm_to_vmem [thread:$0]  %s281, 128, %s283, [#allocation6]
        $region32: #{tpu_custom_call.1} parent=11 // pred_fallthru
          _
        // Predicated region
        $region33: #{tpu_custom_call.1} parent=11 // pred_check
          %p286 = pneg %p174
        $region34: #{tpu_custom_call.1} parent=11 // pred_check_branch
          %288 = sbr.rel (%p286) target = $region36
        $region35: #{tpu_custom_call.1} parent=11 // pred_region
          %290 = vsyncadd [#allocation6], 0
          %s292 = sshll.u32 %s6, 4
          %s293 = int_to_ptr.hbm [resolvable:$true] %s292
          %s294 = sshll.u32 [#allocation7], 4
          %s295 = int_to_ptr.vmem [resolvable:$true] %s294
          %297 = dma.hbm_to_vmem [thread:$0]  %s293, 128, %s295, [#allocation6]
        $region36: #{tpu_custom_call.1} parent=11 // pred_fallthru
          _
        // Predicated region
        $region37: #{tpu_custom_call.1} parent=11 // pred_check
          %p298 = pneg %p195
        $region38: #{tpu_custom_call.1} parent=11 // pred_check_branch
          %300 = sbr.rel (%p298) target = $region40
        $region39: #{tpu_custom_call.1} parent=11 // pred_region
          _
        $region40: #{tpu_custom_call.1} parent=11 // pred_fallthru
          _
      $region12: #{tpu_custom_call.1} parent=5 // pred_fallthru
        _
      %p301 = scmp.lt.s32.totalorder %s22, 2
      // Predicated region
      $region41: #{tpu_custom_call.1} parent=5 // pred_check
        %p302 = pneg %p301
      $region42: #{tpu_custom_call.1} parent=5 // pred_check_branch
        %304 = sbr.rel (%p302) target = $region44
      $region43: #{tpu_custom_call.1} parent=5 // pred_region
        // Predicated region
        $region45: #{tpu_custom_call.1} parent=43 // pred_check
          %p305 = pneg %p42
        $region46: #{tpu_custom_call.1} parent=43 // pred_check_branch
          %307 = sbr.rel (%p305) target = $region48
        $region47: #{tpu_custom_call.1} parent=43 // pred_region
          %s308 = sand.u32 %s32, 1
          %s309 = scalar_lea.sflag [#allocation3], %s308
          %s310 = sand.u32 %s32, 1
          %s311 = smul.addr %s310, 8
          %s312 = scalar_lea.vmem [#allocation2], %s311
          %314 = vsyncadd %s309, 0
          %s315 = smul.addr %s22, 8
          %s316 = scalar_lea.hbm %s0, %s315
          %s318 = sshll.u32 %s316, 4
          %s319 = int_to_ptr.hbm [resolvable:$true] %s318
          %s320 = sshll.u32 %s312, 4
          %s321 = int_to_ptr.vmem [resolvable:$true] %s320
          %323 = dma.hbm_to_vmem [thread:$0]  %s319, 128, %s321, %s309
        $region48: #{tpu_custom_call.1} parent=43 // pred_fallthru
          _
        // Predicated region
        $region49: #{tpu_custom_call.1} parent=43 // pred_check
          %p324 = pneg %p215
        $region50: #{tpu_custom_call.1} parent=43 // pred_check_branch
          %326 = sbr.rel (%p324) target = $region52
        $region51: #{tpu_custom_call.1} parent=43 // pred_region
          %p327 = scmp.lt.s32.totalorder %s22, 1
          %s328 = scalar_select %p327, %s22, 1
          %s329 = scalar_lea.vmem %s8, %s328
        $region52: #{tpu_custom_call.1} parent=43 // pred_fallthru
          _
      $region44: #{tpu_custom_call.1} parent=5 // pred_fallthru
        _
      %p330 = scmp.le.s32.totalorder 1, %s22
      %p331 = scmp.lt.s32.totalorder %s22, 3
      %p332 = pnand %p330, %p331
      %p333 = pneg %p332
      // Predicated region
      $region53: #{tpu_custom_call.1} parent=5 // pred_check
        _
      $region54: #{tpu_custom_call.1} parent=5 // pred_check_branch
        %335 = sbr.rel (%p332) target = $region56
      $region55: #{tpu_custom_call.1} parent=5 // pred_region
        %s336 = ssub.s32 %s22, 1
        %s337 = sand.u32 %s35, 1
        %s338 = scalar_lea.sflag [#allocation3], %s337
        %s339 = sand.u32 %s35, 1
        %s340 = smul.addr %s339, 8
        %s341 = scalar_lea.vmem [#allocation2], %s340
        // Predicated region
        $region57: #{tpu_custom_call.1} parent=55 // pred_check
          %p342 = pneg %p48
        $region58: #{tpu_custom_call.1} parent=55 // pred_check_branch
          %344 = sbr.rel (%p342) target = $region60
        $region59: #{tpu_custom_call.1} parent=55 // pred_region
          %346 = dma.done %s338, 128
        $region60: #{tpu_custom_call.1} parent=55 // pred_fallthru
          _
        // Predicated region
        $region61: #{tpu_custom_call.1} parent=55 // pred_check
          %p347 = pneg %p153
        $region62: #{tpu_custom_call.1} parent=55 // pred_check_branch
          %349 = sbr.rel (%p347) target = $region64
        $region63: #{tpu_custom_call.1} parent=55 // pred_region
          %351 = dma.done [#allocation6], 128
        $region64: #{tpu_custom_call.1} parent=55 // pred_fallthru
          _
        // Predicated region
        $region65: #{tpu_custom_call.1} parent=55 // pred_check
          %p352 = pneg %p174
        $region66: #{tpu_custom_call.1} parent=55 // pred_check_branch
          %354 = sbr.rel (%p352) target = $region68
        $region67: #{tpu_custom_call.1} parent=55 // pred_region
          %356 = dma.done [#allocation6], 128
        $region68: #{tpu_custom_call.1} parent=55 // pred_fallthru
          _
        %s357 = sand.u32 %s35, 1
        %s358 = scalar_lea.sflag [#allocation3], %s357
        %s359 = sand.u32 %s35, 1
        %s360 = smul.addr %s359, 8
        %s361 = scalar_lea.vmem [#allocation2], %s360
        %p362 = pneg %p48
        %p363 = pneg %p45
        %p364 = pneg %p69
        %p365 = pneg %p66
        %p366 = pneg %p90
        %p367 = pneg %p87
        %p368 = pneg %p111
        %p369 = pneg %p108
        %p370 = pneg %p132
        %p371 = pneg %p129
        %p372 = pneg %p153
        %p373 = pneg %p150
        %p374 = pneg %p174
        %p375 = pneg %p171
        %p376 = pneg %p195
        %p377 = pneg %p192
        %p378 = scmp.lt.s32.totalorder %s27, 1
        %s379 = scalar_select %p378, %s27, 1
        %s380 = scalar_lea.vmem %s8, %s379
        %p381 = pneg %p221
        %p382 = pneg %p218
        %p383 = pneg %p247
        %p384 = pneg %p244
        %s385 = sand.u32 %s234, 1
        %s386 = scalar_lea.sflag [#allocation4], %s385
        %s387 = sand.u32 %s234, 1
        %s388 = smul.addr %s387, 8
        %s389 = scalar_lea.vmem [#allocation8], %s388
        %p390 = scmp.lt.s32.totalorder %s27, 1
        %s391 = scalar_select %p390, %s27, 1
        %s392 = scalar_lea.vmem %s8, %s391
        %v393 = vld [vmem:[%s341] sm:$0xff]
        %v394 = vmul.f32 %v393, %v393
        %vm395 = vcmask 261120
        %v396 = vsel %vm395, %v394, 0.0
        %397 = vadd.xlane.f32.xlu0 %v396
        %v398 = vpop.xlane.xlu0 %397
        %v399 = vrcp.pop 32.0
        %v400 = vmul.f32 32.0, %v399
        %v401 = vsub.f32 1.0, %v400
        %v402 = vmul.f32 %v399, %v401
        %v403 = vadd.f32 %v399, %v402
        %vm404 = vweird.f32 %v399
        %v405 = vsel %vm404, %v399, %v403
        %v406 = vmul.f32 %v398, %v405
        %v407 = vadd.f32 %v406, 1e-05
        %v408 = vrsqrt.pop %v407
        %v409 = vmul.f32 %v408, %v407
        %v410 = vmul.f32 %v409, %v408
        %v411 = vmul.f32 0.5, %v410
        %v412 = vsub.f32 1.5, %v411
        %v413 = vmul.f32 %v408, %v412
        %vm414 = vweird.f32 %v407
        %vm415 = vweird.f32 %v408
        %vm416 = vmor %vm414, %vm415
        %v417 = vsel %vm416, %v408, %v413
        %v418 = vmul.f32 %v393, %v417
        %v419 = vld [vmem:[%s1] sm:$0xff]
        %v420 = vld [vmem:[%s1 + $0x8] sm:$0xff]
        %v421 = vld [vmem:[%s1 + $0x10] sm:$0xff]
        %v422 = vld [vmem:[%s1 + $0x18] sm:$0xff]
        %v424 = vsel %vm395, %v418, 0
        %426 = vmatpush.msra.mxu0 0.0
        %427 = vmatpush.msra.mxu0 0.0
        %428 = vmatpush.msra.mxu0 0.0
        %429 = vmatpush.msra.mxu0 0.0
        %430 = vmatpush.msra.mxu0 0.0
        %431 = vmatpush.msra.mxu0 0.0
        %432 = vmatpush.msra.mxu0 0.0
        %433 = vmatpush.msra.mxu0 0.0
        %434 = vmatpush.msra.mxu0 0.0
        %435 = vmatpush.msra.mxu0 0.0
        %436 = vmatpush.msra.mxu0 0.0
        %437 = vmatpush.msra.mxu0 0.0
        %438 = vmatpush.msra.mxu0 %v422
        %439 = vmatpush.msra.mxu0 %v421
        %440 = vmatpush.msra.mxu0 %v420
        %441 = vmatpush.msra.mxu0 %v419
        %442 = vmatmul.f32.gmra.mxu0 %v424
        %v443 = vpop.f32.mrf.mxu0
        %v444 = vadd.f32 0.0, %v443
        %445 = vdwg.mxu0
        %v446 = vld [vmem:[#allocation5] sm:$0xff]
        %v447 = vld [vmem:[#allocation7] sm:$0xff]
        %v448 = vld [vmem:[%s7] sm:$0xff]
        %v449 = vld [vmem:[%s7 + $0x8] sm:$0xff]
        %v450 = vld [vmem:[%s7 + $0x10] sm:$0xff]
        %v451 = vld [vmem:[%s7 + $0x18] sm:$0xff]
        %v452 = vmul.f32 %v444, %v446
        %v454 = vsel %vm395, %v444, 0
        %456 = vmatpush.msra.mxu0 0.0
        %457 = vmatpush.msra.mxu0 0.0
        %458 = vmatpush.msra.mxu0 0.0
        %459 = vmatpush.msra.mxu0 0.0
        %460 = vmatpush.msra.mxu0 0.0
        %461 = vmatpush.msra.mxu0 0.0
        %462 = vmatpush.msra.mxu0 0.0
        %463 = vmatpush.msra.mxu0 0.0
        %464 = vmatpush.msra.mxu0 0.0
        %465 = vmatpush.msra.mxu0 0.0
        %466 = vmatpush.msra.mxu0 0.0
        %467 = vmatpush.msra.mxu0 0.0
        %468 = vmatpush.msra.mxu0 %v451
        %469 = vmatpush.msra.mxu0 %v450
        %470 = vmatpush.msra.mxu0 %v449
        %471 = vmatpush.msra.mxu0 %v448
        %472 = vmatmul.f32.gmra.mxu0 %v454
        %v473 = vpop.f32.mrf.mxu0
        %v474 = vadd.f32 0.0, %v473
        %475 = vdwg.mxu0
        %v476 = vmul.f32 %v474, %v447
        %v477 = vadd.f32 %v452, %v476
        %479 = vrot.lane.b32.xlu0 %v446, 32
        %v480 = vpop.permute.xlu0 %479
        %v482 = vmul.f32 %v444, %v480
        %483 = vrot.lane.b32.xlu0 %v444, 96
        %v484 = vpop.permute.xlu0 %483
        %v485 = vsel %vm395, %v484, 0
        %487 = vmatpush.msra.mxu0 0.0
        %488 = vmatpush.msra.mxu0 0.0
        %489 = vmatpush.msra.mxu0 0.0
        %490 = vmatpush.msra.mxu0 0.0
        %491 = vmatpush.msra.mxu0 0.0
        %492 = vmatpush.msra.mxu0 0.0
        %493 = vmatpush.msra.mxu0 0.0
        %494 = vmatpush.msra.mxu0 0.0
        %495 = vmatpush.msra.mxu0 0.0
        %496 = vmatpush.msra.mxu0 0.0
        %497 = vmatpush.msra.mxu0 0.0
        %498 = vmatpush.msra.mxu0 0.0
        %499 = vmatpush.msra.mxu0 %v451
        %500 = vmatpush.msra.mxu0 %v450
        %501 = vmatpush.msra.mxu0 %v449
        %502 = vmatpush.msra.mxu0 %v448
        %503 = vmatmul.f32.gmra.mxu0 %v485
        %v504 = vpop.f32.mrf.mxu0
        %v505 = vadd.f32 0.0, %v504
        %506 = vdwg.mxu0
        %v507 = vmul.f32 %v505, %v447
        %509 = vrot.lane.b32.xlu0 %v507, 32
        %v510 = vpop.permute.xlu0 %509
        %v512 = vadd.f32 %v482, %v510
        %v513 = vld [vmem:[%s392] sm:$0x1]
        %v514 = vld [vmem:[%s2] sm:$0xff]
        %v515 = vld [vmem:[%s2 + $0x8] sm:$0xff]
        %v516 = vld [vmem:[%s2 + $0x10] sm:$0xff]
        %v517 = vld [vmem:[%s2 + $0x18] sm:$0xff]
        %v519 = vperm.slane %v513, 0
        %522 = vrot.lane.b32.xlu0 %v512, 96
        %v523 = vpop.permute.xlu0 %522
        %vm524 = vcmask 64512
        %v526 = vsel %vm524, %v477, 0
        %v528 = vsel %vm524, %v523, 0
        %530 = vmatpush.xpose.msra.mxu0 0.0
        %531 = vmatpush.xpose.msra.mxu0 0.0
        %532 = vmatpush.xpose.msra.mxu0 0.0
        %533 = vmatpush.xpose.msra.mxu0 0.0
        %534 = vmatpush.xpose.msra.mxu0 0.0
        %535 = vmatpush.xpose.msra.mxu0 0.0
        %536 = vmatpush.xpose.msra.mxu0 0.0
        %537 = vmatpush.xpose.msra.mxu0 0.0
        %538 = vmatpush.xpose.msra.mxu0 0.0
        %539 = vmatpush.xpose.msra.mxu0 0.0
        %540 = vmatpush.xpose.msra.mxu0 0.0
        %541 = vmatpush.xpose.msra.mxu0 0.0
        %542 = vmatpush.xpose.msra.mxu0 0.0
        %543 = vmatpush.xpose.msra.mxu0 0.0
        %544 = vmatpush.xpose.msra.mxu0 0.0
        %545 = vmatpush.xpose.msra.mxu0 %v528
        %546 = vmatmul.f32.gmra.mxu0 %v526
        %v547 = vpop.f32.mrf.mxu0
        %v548 = vadd.f32 %v519, %v547
        %549 = vdwg.mxu0
        %v550 = vsel %vm524, %v548, -inf
        %551 = vmax.xlane.f32.xlu0 %v550
        %v552 = vpop.xlane.xlu0 %551
        %v553 = vsub.f32 %v548, %v552
        %v554 = vmul.f32 %v553, 1.442695
        %v555 = vpow.pop %v554
        %v556 = vsel %vm524, %v555, 0.0
        %557 = vadd.xlane.f32.xlu0 %v556
        %v558 = vpop.xlane.xlu0 %557
        %v559 = vrcp.pop %v558
        %v560 = vmul.f32 %v558, %v559
        %v561 = vsub.f32 1.0, %v560
        %v562 = vmul.f32 %v559, %v561
        %v563 = vadd.f32 %v559, %v562
        %vm564 = vweird.f32 %v558
        %vm565 = vweird.f32 %v559
        %vm566 = vmor %vm564, %vm565
        %v567 = vsel %vm566, %v559, %v563
        %v568 = vand.u32 2147483647, %v558
        %vm569 = vcmp.eq.f32.partialorder %v568, 8.507059e+37
        %v570 = vand.u32 %v558, 2147483648
        %v571 = vor.u32 1.1754944e-38, %v570
        %v572 = vsel %vm569, %v571, %v567
        %v573 = vmul.f32 %v555, %v572
        %574 = vrot.lane.b32.xlu0 %v444, 64
        %v575 = vpop.permute.xlu0 %574
        %v578 = vsel %vm524, %v573, 0
        %580 = vmatpush.msra.mxu0 0.0
        %581 = vmatpush.msra.mxu0 0.0
        %582 = vmatpush.msra.mxu0 0.0
        %583 = vmatpush.msra.mxu0 0.0
        %584 = vmatpush.msra.mxu0 0.0
        %585 = vmatpush.msra.mxu0 0.0
        %586 = vmatpush.msra.mxu0 0.0
        %587 = vmatpush.msra.mxu0 0.0
        %588 = vmatpush.msra.mxu0 0.0
        %589 = vmatpush.msra.mxu0 0.0
        %590 = vmatpush.msra.mxu0 0.0
        %591 = vmatpush.msra.mxu0 0.0
        %592 = vmatpush.msra.mxu0 0.0
        %593 = vmatpush.msra.mxu0 0.0
        %594 = vmatpush.msra.mxu0 0.0
        %595 = vmatpush.msra.mxu0 %v575
        %596 = vmatmul.f32.gmra.mxu0 %v578
        %v597 = vpop.f32.mrf.mxu0
        %v598 = vadd.f32 0.0, %v597
        %599 = vdwg.mxu0
        %600 = vrot.lane.b32.xlu0 %v477, 120
        %v601 = vpop.permute.xlu0 %600
        %602 = vrot.lane.b32.xlu0 %v512, 88
        %v603 = vpop.permute.xlu0 %602
        %v604 = vsel %vm524, %v601, 0
        %v606 = vsel %vm524, %v603, 0
        %608 = vmatpush.xpose.msra.mxu0 0.0
        %609 = vmatpush.xpose.msra.mxu0 0.0
        %610 = vmatpush.xpose.msra.mxu0 0.0
        %611 = vmatpush.xpose.msra.mxu0 0.0
        %612 = vmatpush.xpose.msra.mxu0 0.0
        %613 = vmatpush.xpose.msra.mxu0 0.0
        %614 = vmatpush.xpose.msra.mxu0 0.0
        %615 = vmatpush.xpose.msra.mxu0 0.0
        %616 = vmatpush.xpose.msra.mxu0 0.0
        %617 = vmatpush.xpose.msra.mxu0 0.0
        %618 = vmatpush.xpose.msra.mxu0 0.0
        %619 = vmatpush.xpose.msra.mxu0 0.0
        %620 = vmatpush.xpose.msra.mxu0 0.0
        %621 = vmatpush.xpose.msra.mxu0 0.0
        %622 = vmatpush.xpose.msra.mxu0 0.0
        %623 = vmatpush.xpose.msra.mxu0 %v606
        %624 = vmatmul.f32.gmra.mxu0 %v604
        %v625 = vpop.f32.mrf.mxu0
        %v626 = vadd.f32 %v519, %v625
        %627 = vdwg.mxu0
        %v628 = vsel %vm524, %v626, -inf
        %629 = vmax.xlane.f32.xlu0 %v628
        %v630 = vpop.xlane.xlu0 %629
        %v631 = vsub.f32 %v626, %v630
        %v632 = vmul.f32 %v631, 1.442695
        %v633 = vpow.pop %v632
        %v634 = vsel %vm524, %v633, 0.0
        %635 = vadd.xlane.f32.xlu0 %v634
        %v636 = vpop.xlane.xlu0 %635
        %v637 = vrcp.pop %v636
        %v638 = vmul.f32 %v636, %v637
        %v639 = vsub.f32 1.0, %v638
        %v640 = vmul.f32 %v637, %v639
        %v641 = vadd.f32 %v637, %v640
        %vm642 = vweird.f32 %v636
        %vm643 = vweird.f32 %v637
        %vm644 = vmor %vm642, %vm643
        %v645 = vsel %vm644, %v637, %v641
        %v646 = vand.u32 2147483647, %v636
        %vm647 = vcmp.eq.f32.partialorder %v646, 8.507059e+37
        %v648 = vand.u32 %v636, 2147483648
        %v649 = vor.u32 1.1754944e-38, %v648
        %v650 = vsel %vm647, %v649, %v645
        %v651 = vmul.f32 %v633, %v650
        %652 = vrot.lane.b32.xlu0 %v444, 56
        %v653 = vpop.permute.xlu0 %652
        %v656 = vsel %vm524, %v651, 0
        %658 = vmatpush.msra.mxu0 0.0
        %659 = vmatpush.msra.mxu0 0.0
        %660 = vmatpush.msra.mxu0 0.0
        %661 = vmatpush.msra.mxu0 0.0
        %662 = vmatpush.msra.mxu0 0.0
        %663 = vmatpush.msra.mxu0 0.0
        %664 = vmatpush.msra.mxu0 0.0
        %665 = vmatpush.msra.mxu0 0.0
        %666 = vmatpush.msra.mxu0 0.0
        %667 = vmatpush.msra.mxu0 0.0
        %668 = vmatpush.msra.mxu0 0.0
        %669 = vmatpush.msra.mxu0 0.0
        %670 = vmatpush.msra.mxu0 0.0
        %671 = vmatpush.msra.mxu0 0.0
        %672 = vmatpush.msra.mxu0 0.0
        %673 = vmatpush.msra.mxu0 %v653
        %674 = vmatmul.f32.gmra.mxu0 %v656
        %v675 = vpop.f32.mrf.mxu0
        %v676 = vadd.f32 0.0, %v675
        %677 = vdwg.mxu0
        %v679 = vsel %vm524, %v676, 0
        %681 = vmatpush.msra.mxu0 0.0
        %682 = vmatpush.msra.mxu0 0.0
        %683 = vmatpush.msra.mxu0 0.0
        %684 = vmatpush.msra.mxu0 0.0
        %685 = vmatpush.msra.mxu0 0.0
        %686 = vmatpush.msra.mxu0 0.0
        %687 = vmatpush.msra.mxu0 0.0
        %688 = vmatpush.msra.mxu0 0.0
        %689 = vmatpush.msra.mxu0 0.0
        %690 = vmatpush.msra.mxu0 0.0
        %691 = vmatpush.msra.mxu0 0.0
        %692 = vmatpush.msra.mxu0 0.0
        %693 = vmatpush.msra.mxu0 0.0
        %694 = vmatpush.msra.mxu0 0.0
        %695 = vmatpush.msra.mxu0 0.0
        %696 = vmatpush.msra.mxu0 %v515
        %697 = vmatmul.f32.gmra.mxu0 %v679
        %v698 = vpop.f32.mrf.mxu0
        %v699 = vadd.f32 0.0, %v698
        %700 = vdwg.mxu0
        %v702 = vsel %vm524, %v598, 0
        %704 = vmatpush.msra.mxu0 0.0
        %705 = vmatpush.msra.mxu0 0.0
        %706 = vmatpush.msra.mxu0 0.0
        %707 = vmatpush.msra.mxu0 0.0
        %708 = vmatpush.msra.mxu0 0.0
        %709 = vmatpush.msra.mxu0 0.0
        %710 = vmatpush.msra.mxu0 0.0
        %711 = vmatpush.msra.mxu0 0.0
        %712 = vmatpush.msra.mxu0 0.0
        %713 = vmatpush.msra.mxu0 0.0
        %714 = vmatpush.msra.mxu0 0.0
        %715 = vmatpush.msra.mxu0 0.0
        %716 = vmatpush.msra.mxu0 0.0
        %717 = vmatpush.msra.mxu0 0.0
        %718 = vmatpush.msra.mxu0 0.0
        %719 = vmatpush.msra.mxu0 %v514
        %720 = vmatmul.f32.gmra.mxu0 %v702
        %v721 = vpop.f32.mrf.mxu0
        %v722 = vadd.f32 %v699, %v721
        %723 = vdwg.mxu0
        %724 = vrot.lane.b32.xlu0 %v477, 112
        %v725 = vpop.permute.xlu0 %724
        %726 = vrot.lane.b32.xlu0 %v512, 80
        %v727 = vpop.permute.xlu0 %726
        %v728 = vsel %vm524, %v725, 0
        %v730 = vsel %vm524, %v727, 0
        %732 = vmatpush.xpose.msra.mxu0 0.0
        %733 = vmatpush.xpose.msra.mxu0 0.0
        %734 = vmatpush.xpose.msra.mxu0 0.0
        %735 = vmatpush.xpose.msra.mxu0 0.0
        %736 = vmatpush.xpose.msra.mxu0 0.0
        %737 = vmatpush.xpose.msra.mxu0 0.0
        %738 = vmatpush.xpose.msra.mxu0 0.0
        %739 = vmatpush.xpose.msra.mxu0 0.0
        %740 = vmatpush.xpose.msra.mxu0 0.0
        %741 = vmatpush.xpose.msra.mxu0 0.0
        %742 = vmatpush.xpose.msra.mxu0 0.0
        %743 = vmatpush.xpose.msra.mxu0 0.0
        %744 = vmatpush.xpose.msra.mxu0 0.0
        %745 = vmatpush.xpose.msra.mxu0 0.0
        %746 = vmatpush.xpose.msra.mxu0 0.0
        %747 = vmatpush.xpose.msra.mxu0 %v730
        %748 = vmatmul.f32.gmra.mxu0 %v728
        %v749 = vpop.f32.mrf.mxu0
        %v750 = vadd.f32 %v519, %v749
        %751 = vdwg.mxu0
        %v752 = vsel %vm524, %v750, -inf
        %753 = vmax.xlane.f32.xlu0 %v752
        %v754 = vpop.xlane.xlu0 %753
        %v755 = vsub.f32 %v750, %v754
        %v756 = vmul.f32 %v755, 1.442695
        %v757 = vpow.pop %v756
        %v758 = vsel %vm524, %v757, 0.0
        %759 = vadd.xlane.f32.xlu0 %v758
        %v760 = vpop.xlane.xlu0 %759
        %v761 = vrcp.pop %v760
        %v762 = vmul.f32 %v760, %v761
        %v763 = vsub.f32 1.0, %v762
        %v764 = vmul.f32 %v761, %v763
        %v765 = vadd.f32 %v761, %v764
        %vm766 = vweird.f32 %v760
        %vm767 = vweird.f32 %v761
        %vm768 = vmor %vm766, %vm767
        %v769 = vsel %vm768, %v761, %v765
        %v770 = vand.u32 2147483647, %v760
        %vm771 = vcmp.eq.f32.partialorder %v770, 8.507059e+37
        %v772 = vand.u32 %v760, 2147483648
        %v773 = vor.u32 1.1754944e-38, %v772
        %v774 = vsel %vm771, %v773, %v769
        %v775 = vmul.f32 %v757, %v774
        %776 = vrot.lane.b32.xlu0 %v444, 48
        %v777 = vpop.permute.xlu0 %776
        %v780 = vsel %vm524, %v775, 0
        %782 = vmatpush.msra.mxu0 0.0
        %783 = vmatpush.msra.mxu0 0.0
        %784 = vmatpush.msra.mxu0 0.0
        %785 = vmatpush.msra.mxu0 0.0
        %786 = vmatpush.msra.mxu0 0.0
        %787 = vmatpush.msra.mxu0 0.0
        %788 = vmatpush.msra.mxu0 0.0
        %789 = vmatpush.msra.mxu0 0.0
        %790 = vmatpush.msra.mxu0 0.0
        %791 = vmatpush.msra.mxu0 0.0
        %792 = vmatpush.msra.mxu0 0.0
        %793 = vmatpush.msra.mxu0 0.0
        %794 = vmatpush.msra.mxu0 0.0
        %795 = vmatpush.msra.mxu0 0.0
        %796 = vmatpush.msra.mxu0 0.0
        %797 = vmatpush.msra.mxu0 %v777
        %798 = vmatmul.f32.gmra.mxu0 %v780
        %v799 = vpop.f32.mrf.mxu0
        %v800 = vadd.f32 0.0, %v799
        %801 = vdwg.mxu0
        %v803 = vsel %vm524, %v800, 0
        %805 = vmatpush.msra.mxu0 0.0
        %806 = vmatpush.msra.mxu0 0.0
        %807 = vmatpush.msra.mxu0 0.0
        %808 = vmatpush.msra.mxu0 0.0
        %809 = vmatpush.msra.mxu0 0.0
        %810 = vmatpush.msra.mxu0 0.0
        %811 = vmatpush.msra.mxu0 0.0
        %812 = vmatpush.msra.mxu0 0.0
        %813 = vmatpush.msra.mxu0 0.0
        %814 = vmatpush.msra.mxu0 0.0
        %815 = vmatpush.msra.mxu0 0.0
        %816 = vmatpush.msra.mxu0 0.0
        %817 = vmatpush.msra.mxu0 0.0
        %818 = vmatpush.msra.mxu0 0.0
        %819 = vmatpush.msra.mxu0 0.0
        %820 = vmatpush.msra.mxu0 %v516
        %821 = vmatmul.f32.gmra.mxu0 %v803
        %v822 = vpop.f32.mrf.mxu0
        %v823 = vadd.f32 0.0, %v822
        %824 = vdwg.mxu0
        %v825 = vadd.f32 %v722, %v823
        %826 = vrot.lane.b32.xlu0 %v477, 104
        %v827 = vpop.permute.xlu0 %826
        %828 = vrot.lane.b32.xlu0 %v512, 72
        %v829 = vpop.permute.xlu0 %828
        %v830 = vsel %vm524, %v827, 0
        %v832 = vsel %vm524, %v829, 0
        %834 = vmatpush.xpose.msra.mxu0 0.0
        %835 = vmatpush.xpose.msra.mxu0 0.0
        %836 = vmatpush.xpose.msra.mxu0 0.0
        %837 = vmatpush.xpose.msra.mxu0 0.0
        %838 = vmatpush.xpose.msra.mxu0 0.0
        %839 = vmatpush.xpose.msra.mxu0 0.0
        %840 = vmatpush.xpose.msra.mxu0 0.0
        %841 = vmatpush.xpose.msra.mxu0 0.0
        %842 = vmatpush.xpose.msra.mxu0 0.0
        %843 = vmatpush.xpose.msra.mxu0 0.0
        %844 = vmatpush.xpose.msra.mxu0 0.0
        %845 = vmatpush.xpose.msra.mxu0 0.0
        %846 = vmatpush.xpose.msra.mxu0 0.0
        %847 = vmatpush.xpose.msra.mxu0 0.0
        %848 = vmatpush.xpose.msra.mxu0 0.0
        %849 = vmatpush.xpose.msra.mxu0 %v832
        %850 = vmatmul.f32.gmra.mxu0 %v830
        %v851 = vpop.f32.mrf.mxu0
        %v852 = vadd.f32 %v519, %v851
        %853 = vdwg.mxu0
        %v854 = vsel %vm524, %v852, -inf
        %855 = vmax.xlane.f32.xlu0 %v854
        %v856 = vpop.xlane.xlu0 %855
        %v857 = vsub.f32 %v852, %v856
        %v858 = vmul.f32 %v857, 1.442695
        %v859 = vpow.pop %v858
        %v860 = vsel %vm524, %v859, 0.0
        %861 = vadd.xlane.f32.xlu0 %v860
        %v862 = vpop.xlane.xlu0 %861
        %v863 = vrcp.pop %v862
        %v864 = vmul.f32 %v862, %v863
        %v865 = vsub.f32 1.0, %v864
        %v866 = vmul.f32 %v863, %v865
        %v867 = vadd.f32 %v863, %v866
        %vm868 = vweird.f32 %v862
        %vm869 = vweird.f32 %v863
        %vm870 = vmor %vm868, %vm869
        %v871 = vsel %vm870, %v863, %v867
        %v872 = vand.u32 2147483647, %v862
        %vm873 = vcmp.eq.f32.partialorder %v872, 8.507059e+37
        %v874 = vand.u32 %v862, 2147483648
        %v875 = vor.u32 1.1754944e-38, %v874
        %v876 = vsel %vm873, %v875, %v871
        %v877 = vmul.f32 %v859, %v876
        %878 = vrot.lane.b32.xlu0 %v444, 40
        %v879 = vpop.permute.xlu0 %878
        %v882 = vsel %vm524, %v877, 0
        %884 = vmatpush.msra.mxu0 0.0
        %885 = vmatpush.msra.mxu0 0.0
        %886 = vmatpush.msra.mxu0 0.0
        %887 = vmatpush.msra.mxu0 0.0
        %888 = vmatpush.msra.mxu0 0.0
        %889 = vmatpush.msra.mxu0 0.0
        %890 = vmatpush.msra.mxu0 0.0
        %891 = vmatpush.msra.mxu0 0.0
        %892 = vmatpush.msra.mxu0 0.0
        %893 = vmatpush.msra.mxu0 0.0
        %894 = vmatpush.msra.mxu0 0.0
        %895 = vmatpush.msra.mxu0 0.0
        %896 = vmatpush.msra.mxu0 0.0
        %897 = vmatpush.msra.mxu0 0.0
        %898 = vmatpush.msra.mxu0 0.0
        %899 = vmatpush.msra.mxu0 %v879
        %900 = vmatmul.f32.gmra.mxu0 %v882
        %v901 = vpop.f32.mrf.mxu0
        %v902 = vadd.f32 0.0, %v901
        %903 = vdwg.mxu0
        %v905 = vsel %vm524, %v902, 0
        %907 = vmatpush.msra.mxu0 0.0
        %908 = vmatpush.msra.mxu0 0.0
        %909 = vmatpush.msra.mxu0 0.0
        %910 = vmatpush.msra.mxu0 0.0
        %911 = vmatpush.msra.mxu0 0.0
        %912 = vmatpush.msra.mxu0 0.0
        %913 = vmatpush.msra.mxu0 0.0
        %914 = vmatpush.msra.mxu0 0.0
        %915 = vmatpush.msra.mxu0 0.0
        %916 = vmatpush.msra.mxu0 0.0
        %917 = vmatpush.msra.mxu0 0.0
        %918 = vmatpush.msra.mxu0 0.0
        %919 = vmatpush.msra.mxu0 0.0
        %920 = vmatpush.msra.mxu0 0.0
        %921 = vmatpush.msra.mxu0 0.0
        %922 = vmatpush.msra.mxu0 %v517
        %923 = vmatmul.f32.gmra.mxu0 %v905
        %v924 = vpop.f32.mrf.mxu0
        %v925 = vadd.f32 0.0, %v924
        %926 = vdwg.mxu0
        %v927 = vadd.f32 %v825, %v925
        %v928 = vadd.f32 %v393, %v927
        %v929 = vmul.f32 %v928, %v928
        %v930 = vsel %vm395, %v929, 0.0
        %931 = vadd.xlane.f32.xlu0 %v930
        %v932 = vpop.xlane.xlu0 %931
        %v933 = vmul.f32 %v932, %v405
        %v934 = vadd.f32 %v933, 1e-05
        %v935 = vrsqrt.pop %v934
        %v936 = vmul.f32 %v935, %v934
        %v937 = vmul.f32 %v936, %v935
        %v938 = vmul.f32 0.5, %v937
        %v939 = vsub.f32 1.5, %v938
        %v940 = vmul.f32 %v935, %v939
        %vm941 = vweird.f32 %v934
        %vm942 = vweird.f32 %v935
        %vm943 = vmor %vm941, %vm942
        %v944 = vsel %vm943, %v935, %v940
        %v945 = vmul.f32 %v928, %v944
        %v946 = vld [vmem:[%s3] sm:$0xff]
        %v947 = vld [vmem:[%s3 + $0x8] sm:$0xff]
        %v948 = vld [vmem:[%s3 + $0x10] sm:$0xff]
        %v949 = vld [vmem:[%s3 + $0x18] sm:$0xff]
        %v950 = vld [vmem:[%s3 + $0x20] sm:$0xff]
        %v951 = vld [vmem:[%s3 + $0x28] sm:$0xff]
        %v952 = vld [vmem:[%s3 + $0x30] sm:$0xff]
        %v953 = vld [vmem:[%s3 + $0x38] sm:$0xff]
        %v955 = vsel %vm395, %v945, 0
        %957 = vmatpush.msra.mxu0 0.0
        %958 = vmatpush.msra.mxu0 0.0
        %959 = vmatpush.msra.mxu0 0.0
        %960 = vmatpush.msra.mxu0 0.0
        %961 = vmatpush.msra.mxu0 0.0
        %962 = vmatpush.msra.mxu0 0.0
        %963 = vmatpush.msra.mxu0 0.0
        %964 = vmatpush.msra.mxu0 0.0
        %965 = vmatpush.msra.mxu0 0.0
        %966 = vmatpush.msra.mxu0 0.0
        %967 = vmatpush.msra.mxu0 0.0
        %968 = vmatpush.msra.mxu0 0.0
        %969 = vmatpush.msra.mxu0 %v952
        %970 = vmatpush.msra.mxu0 %v950
        %971 = vmatpush.msra.mxu0 %v948
        %972 = vmatpush.msra.mxu0 %v946
        %973 = vmatmul.f32.gmra.mxu0 %v955
        %v974 = vpop.f32.mrf.mxu0
        %v975 = vadd.f32 0.0, %v974
        %976 = vdwg.mxu0
        %977 = vmatpush.msra.mxu0 0.0
        %978 = vmatpush.msra.mxu0 0.0
        %979 = vmatpush.msra.mxu0 0.0
        %980 = vmatpush.msra.mxu0 0.0
        %981 = vmatpush.msra.mxu0 0.0
        %982 = vmatpush.msra.mxu0 0.0
        %983 = vmatpush.msra.mxu0 0.0
        %984 = vmatpush.msra.mxu0 0.0
        %985 = vmatpush.msra.mxu0 0.0
        %986 = vmatpush.msra.mxu0 0.0
        %987 = vmatpush.msra.mxu0 0.0
        %988 = vmatpush.msra.mxu0 0.0
        %989 = vmatpush.msra.mxu0 %v953
        %990 = vmatpush.msra.mxu0 %v951
        %991 = vmatpush.msra.mxu0 %v949
        %992 = vmatpush.msra.mxu0 %v947
        %993 = vmatmul.f32.gmra.mxu0 %v955
        %v994 = vpop.f32.mrf.mxu0
        %v995 = vadd.f32 0.0, %v994
        %996 = vdwg.mxu0
        %v997 = vxor.u32 %v975, 2147483648
        %v998 = vmul.f32 %v997, 1.442695
        %v999 = vpow.pop %v998
        %v1000 = vadd.f32 %v999, 1.0
        %v1001 = vrcp.pop %v1000
        %v1002 = vmul.f32 %v1000, %v1001
        %v1003 = vsub.f32 1.0, %v1002
        %v1004 = vmul.f32 %v1001, %v1003
        %v1005 = vadd.f32 %v1001, %v1004
        %vm1006 = vweird.f32 %v1000
        %vm1007 = vweird.f32 %v1001
        %vm1008 = vmor %vm1006, %vm1007
        %v1009 = vsel %vm1008, %v1001, %v1005
        %v1010 = vand.u32 2147483647, %v1000
        %vm1011 = vcmp.eq.f32.partialorder %v1010, 8.507059e+37
        %v1012 = vand.u32 %v1000, 2147483648
        %v1013 = vor.u32 1.1754944e-38, %v1012
        %v1014 = vsel %vm1011, %v1013, %v1009
        %v1015 = vmul.f32 1.0, %v1014
        %v1016 = vmul.f32 %v975, %v1015
        %v1017 = vmul.f32 %v1016, %v995
        %v1018 = vld [vmem:[%s4] sm:$0xff]
        %v1019 = vld [vmem:[%s4 + $0x8] sm:$0xff]
        %v1020 = vld [vmem:[%s4 + $0x10] sm:$0xff]
        %v1021 = vld [vmem:[%s4 + $0x18] sm:$0xff]
        %v1022 = vld [vmem:[%s4 + $0x20] sm:$0xff]
        %v1023 = vld [vmem:[%s4 + $0x28] sm:$0xff]
        %v1024 = vld [vmem:[%s4 + $0x30] sm:$0xff]
        %v1025 = vld [vmem:[%s4 + $0x38] sm:$0xff]
        %v1026 = vld [vmem:[%s4 + $0x40] sm:$0xff]
        %v1027 = vld [vmem:[%s4 + $0x48] sm:$0xff]
        %v1028 = vld [vmem:[%s4 + $0x50] sm:$0xff]
        %v1029 = vld [vmem:[%s4 + $0x58] sm:$0xff]
        %v1030 = vld [vmem:[%s4 + $0x60] sm:$0xff]
        %v1031 = vld [vmem:[%s4 + $0x68] sm:$0xff]
        %v1032 = vld [vmem:[%s4 + $0x70] sm:$0xff]
        %v1033 = vld [vmem:[%s4 + $0x78] sm:$0xff]
        %1034 = vmatpush.msra.mxu0 %v1033
        %1035 = vmatpush.msra.mxu0 %v1032
        %1036 = vmatpush.msra.mxu0 %v1031
        %1037 = vmatpush.msra.mxu0 %v1030
        %1038 = vmatpush.msra.mxu0 %v1029
        %1039 = vmatpush.msra.mxu0 %v1028
        %1040 = vmatpush.msra.mxu0 %v1027
        %1041 = vmatpush.msra.mxu0 %v1026
        %1042 = vmatpush.msra.mxu0 %v1025
        %1043 = vmatpush.msra.mxu0 %v1024
        %1044 = vmatpush.msra.mxu0 %v1023
        %1045 = vmatpush.msra.mxu0 %v1022
        %1046 = vmatpush.msra.mxu0 %v1021
        %1047 = vmatpush.msra.mxu0 %v1020
        %1048 = vmatpush.msra.mxu0 %v1019
        %1049 = vmatpush.msra.mxu0 %v1018
        %1050 = vmatmul.f32.gmra.mxu0 %v1017
        %v1051 = vpop.f32.mrf.mxu0
        %v1052 = vadd.f32 0.0, %v1051
        %1053 = vdwg.mxu0
        %v1054 = vadd.f32 %v928, %v1052
        %1055 = vst.msk [vmem:[%s389] sm:$0xff] %vm395, %v1054
        %s1056 = sand.u32 %s234, 1
        %s1057 = scalar_lea.sflag [#allocation4], %s1056
        %s1058 = sand.u32 %s234, 1
        %s1059 = smul.addr %s1058, 8
        %s1060 = scalar_lea.vmem [#allocation8], %s1059
        // Predicated region
        $region69: #{tpu_custom_call.1} parent=55 // pred_check
          %p1061 = pneg %p244
        $region70: #{tpu_custom_call.1} parent=55 // pred_check_branch
          %1063 = sbr.rel (%p1061) target = $region72
        $region71: #{tpu_custom_call.1} parent=55 // pred_region
          %1065 = vsyncadd %s1057, 0
          %s1066 = smul.addr %s27, 8
          %s1067 = scalar_lea.hbm %s9, %s1066
          %s1069 = sshll.u32 %s1060, 4
          %s1070 = int_to_ptr.vmem [resolvable:$true] %s1069
          %s1071 = sshll.u32 %s1067, 4
          %s1072 = int_to_ptr.hbm [resolvable:$true] %s1071
          %1074 = dma.vmem_to_hbm [thread:$0]  %s1070, 128, %s1072, %s1057
        $region72: #{tpu_custom_call.1} parent=55 // pred_fallthru
          _
      $region56: #{tpu_custom_call.1} parent=5 // pred_fallthru
        _
      %p1075 = scmp.le.s32.totalorder 2, %s22
      // Predicated region
      $region73: #{tpu_custom_call.1} parent=5 // pred_check
        %p1076 = pneg %p1075
      $region74: #{tpu_custom_call.1} parent=5 // pred_check_branch
        %1078 = sbr.rel (%p1076) target = $region76
      $region75: #{tpu_custom_call.1} parent=5 // pred_region
        %s1079 = ssub.s32 %s22, 2
        // Predicated region
        $region77: #{tpu_custom_call.1} parent=75 // pred_check
          %p1080 = pneg %p250
        $region78: #{tpu_custom_call.1} parent=75 // pred_check_branch
          %1082 = sbr.rel (%p1080) target = $region80
        $region79: #{tpu_custom_call.1} parent=75 // pred_region
          %s1083 = sand.u32 %s235, 1
          %s1084 = scalar_lea.sflag [#allocation4], %s1083
          %s1085 = sand.u32 %s235, 1
          %s1086 = smul.addr %s1085, 8
          %s1087 = scalar_lea.vmem [#allocation8], %s1086
          %1089 = dma.done %s1084, 128
        $region80: #{tpu_custom_call.1} parent=75 // pred_fallthru
          _
      $region76: #{tpu_custom_call.1} parent=5 // pred_fallthru
        _
    $region6: #{tpu_custom_call.1} parent=1 // loop_footer
      %s26 = sadd.s32 1, %s22
    $region7: #{tpu_custom_call.1} parent=1 // loop_footer_branch
      %21 = sbr.rel target = $region3
    $region8: #{tpu_custom_call.1} parent=1 // loop_exit
      _
    %1090 = vsyncpa [#allocation3], 1
    %s1091 = scalar_lea.sflag [#allocation3], 1
    %1092 = vsyncpa %s1091, 1
    %1093 = vsyncpa [#allocation6], 1
    %1094 = vsyncpa [#allocation4], 1
    %s1095 = scalar_lea.sflag [#allocation4], 1
    %1096 = vsyncpa %s1095, 1

</llo_original>
